<compile_context>
chip_gen: v6e
topology: v6e:2x2x1
jax: 0.10.0
libtpu: 0.0.40
codegen_flags: <defaults>
</compile_context>

<pallas_src>
import functools

import jax
import jax.numpy as jnp
from jax.experimental import pallas as pl
from jax.experimental.pallas import tpu as pltpu


# ------------------------------------------------------------------ kernel ---

def _rnn_head_kernel(seq_len, batch, num_layers, *refs):
    # refs layout (all full-array VMEM refs, single kernel invocation):
    #   x_ref                      (seq*batch, input_size)   time-major, flattened
    #   w0ih_ref                   (input_size, hidden)      = W_ih_l0.T
    #   w0hh_ref                   (hidden, hidden)          = W_hh_l0.T
    #   b0_ref                     (1, hidden)               = b_ih_l0 + b_hh_l0
    #   [w_stack_l, b_l] * (L-1)   (2*hidden, hidden), (1, hidden)
    #   w1_ref, b1_ref, w2_ref, b2_ref   (pre-transposed head weights)
    #   out_ref                    (batch, num_classes)
    idx = 0
    x_ref = refs[idx]; idx += 1
    w0ih_ref = refs[idx]; idx += 1
    w0hh_ref = refs[idx]; idx += 1
    b0_ref = refs[idx]; idx += 1
    upper = []
    for _ in range(num_layers - 1):
        upper.append((refs[idx], refs[idx + 1]))
        idx += 2
    w1_ref, b1_ref, w2_ref, b2_ref = refs[idx:idx + 4]; idx += 4
    out_ref = refs[idx]

    hidden = w0hh_ref.shape[0]
    f32 = jnp.float32

    # ---- Hoisted, time-independent layer-0 input projection (one big-M matmul).
    proj0 = (jnp.dot(x_ref[...], w0ih_ref[...], preferred_element_type=f32)
             + b0_ref[...])                                    # (seq*batch, hidden)

    # Load constant operands once.
    w0hh = w0hh_ref[...]
    upper_w = [(w_ref[...], b_ref[...]) for (w_ref, b_ref) in upper]
    w1 = w1_ref[...]; b1 = b1_ref[...]
    w2 = w2_ref[...]; b2 = b2_ref[...]

    # h0 = zeros (PyTorch default when no initial hidden state is passed).
    hs = [jnp.zeros((batch, hidden), f32) for _ in range(num_layers)]

    # ---- Fully unrolled Elman recurrence over time (seq_len is small & static).
    for t in range(seq_len):
        # Layer 0: input projection precomputed (bias folded in), only h @ Whh.T left.
        h0 = jnp.tanh(proj0[t * batch:(t + 1) * batch, :]
                      + jnp.dot(hs[0], w0hh, preferred_element_type=f32))
        hs[0] = h0
        inp = h0
        # Layers 1..L-1: single fused matmul per layer.
        for l in range(1, num_layers):
            w_stack, b_l = upper_w[l - 1]
            cat = jnp.concatenate([inp, hs[l]], axis=1)        # (batch, 2*hidden)
            h_new = jnp.tanh(jnp.dot(cat, w_stack, preferred_element_type=f32) + b_l)
            hs[l] = h_new
            inp = h_new

    # ---- Head.  TODO(synk): training-mode Dropout(0.3) omitted (inference = identity).
    z = jnp.dot(hs[-1], w1, preferred_element_type=f32) + b1
    z = jnp.where(z > 0, z, 0.01 * z)                          # LeakyReLU(0.01)
    out_ref[...] = jnp.dot(z, w2, preferred_element_type=f32) + b2


# ----------------------------------------------------------------- wrapper ---

def keypoint_rnn_forward(x, params, *, hidden_size, num_layers, num_classes):
    """x: (batch, seq, input_size) float32 -> (batch, num_classes) float32."""
    batch, seq_len, input_size = x.shape

    # Time-major, then flatten (seq, batch) so the hoisted layer-0 projection is a
    # single (seq*batch, input) @ (input, hidden) matmul inside the kernel.
    x2d = jnp.transpose(x, (1, 0, 2)).reshape(seq_len * batch, input_size)

    # One-time (XLA-side) weight packing: transposes, stacked [Wih.T; Whh.T], summed biases.
    weight_args = [
        params["w_ih_l0"].T,                                    # (input, hidden)
        params["w_hh_l0"].T,                                    # (hidden, hidden)
        params["b_ih_l0"] + params["b_hh_l0"],                  # (1, hidden)
    ]
    for l in range(1, num_layers):
        weight_args.append(jnp.concatenate(
            [params[f"w_ih_l{l}"].T, params[f"w_hh_l{l}"].T], axis=0))  # (2H, H)
        weight_args.append(params[f"b_ih_l{l}"] + params[f"b_hh_l{l}"])  # (1, H)
    weight_args += [params["w1"].T, params["b1"],               # (H, H), (1, H)
                    params["w2"].T, params["b2"]]               # (H, C), (1, C)

    kernel = functools.partial(_rnn_head_kernel, seq_len, batch, num_layers)

    vmem_spec = pl.BlockSpec(memory_space=pltpu.MemorySpace.VMEM)
    num_inputs = 1 + len(weight_args)

    return pl.pallas_call(
        kernel,
        out_shape=jax.ShapeDtypeStruct((batch, num_classes), jnp.float32),
        in_specs=[vmem_spec] * num_inputs,      # whole arrays resident in VMEM
        out_specs=vmem_spec,                    # single invocation, no grid
    )(x2d, *weight_args)


# --------------------------------------------------------------- reference ---

def keypoint_rnn_reference(x, params, *, hidden_size, num_layers):
    batch, seq_len, _ = x.shape
    h = [jnp.zeros((batch, hidden_size), jnp.float32) for _ in range(num_layers)]
    for t in range(seq_len):
        inp = x[:, t, :]
        for l in range(num_layers):
            wih = params[f"w_ih_l{l}"]
            whh = params[f"w_hh_l{l}"]
            bih = params[f"b_ih_l{l}"]
            bhh = params[f"b_hh_l{l}"]
            h[l] = jnp.tanh(inp @ wih.T + h[l] @ whh.T + bih + bhh)
            inp = h[l]
    z = h[-1] @ params["w1"].T + params["b1"]
    z = jnp.where(z > 0, z, 0.01 * z)
    return z @ params["w2"].T + params["b2"]


# ------------------------------------------------------------------- setup ---

def init_params(key, *, input_size, hidden_size, num_layers, num_classes):
    """Deterministic synthetic weights (PyTorch-style uniform(-1/sqrt(H), 1/sqrt(H)))."""
    params = {}
    bound = 1.0 / jnp.sqrt(jnp.float32(hidden_size))

    def uni(k, shape):
        return jax.random.uniform(k, shape, jnp.float32, -bound, bound)

    keys = jax.random.split(key, 4 * num_layers + 4)
    ki = 0
    for l in range(num_layers):
        in_dim = input_size if l == 0 else hidden_size
        params[f"w_ih_l{l}"] = uni(keys[ki], (hidden_size, in_dim)); ki += 1
        params[f"w_hh_l{l}"] = uni(keys[ki], (hidden_size, hidden_size)); ki += 1
        params[f"b_ih_l{l}"] = uni(keys[ki], (1, hidden_size)); ki += 1
        params[f"b_hh_l{l}"] = uni(keys[ki], (1, hidden_size)); ki += 1
    params["w1"] = uni(keys[ki], (hidden_size, hidden_size)); ki += 1
    params["b1"] = uni(keys[ki], (1, hidden_size)); ki += 1
    params["w2"] = uni(keys[ki], (num_classes, hidden_size)); ki += 1
    params["b2"] = uni(keys[ki], (1, num_classes)); ki += 1
    return params


if __name__ == "__main__":
    batch, seq_len = 2, 8
    input_size, hidden_size, num_layers, num_classes = 16, 32, 2, 5

    root = jax.random.PRNGKey(0)
    kx, kp = jax.random.split(root)
    x = jax.random.normal(kx, (batch, seq_len, input_size), jnp.float32)
    params = init_params(kp, input_size=input_size, hidden_size=hidden_size,
                         num_layers=num_layers, num_classes=num_classes)

    out = keypoint_rnn_forward(x, params, hidden_size=hidden_size,
                               num_layers=num_layers, num_classes=num_classes)
    out = jax.block_until_ready(out)

    ref = keypoint_rnn_reference(x, params, hidden_size=hidden_size,
                                 num_layers=num_layers)
    assert out.shape == (batch, num_classes)
    assert jnp.allclose(out, ref, atol=1e-4, rtol=1e-4), "mismatch vs JAX reference"

    print("KERNEL_OK")
</pallas_src>

<mosaic_0001>
module attributes {stable_mosaic.version = 11 : i64} {
  func.func @_rnn_head_kernel(%arg0: memref<16x16xf32, #tpu.memory_space<vmem>>, %arg1: memref<16x32xf32, #tpu.memory_space<vmem>>, %arg2: memref<32x32xf32, #tpu.memory_space<vmem>>, %arg3: memref<1x32xf32, #tpu.memory_space<vmem>>, %arg4: memref<64x32xf32, #tpu.memory_space<vmem>>, %arg5: memref<1x32xf32, #tpu.memory_space<vmem>>, %arg6: memref<32x32xf32, #tpu.memory_space<vmem>>, %arg7: memref<1x32xf32, #tpu.memory_space<vmem>>, %arg8: memref<32x5xf32, #tpu.memory_space<vmem>>, %arg9: memref<1x5xf32, #tpu.memory_space<vmem>>, %arg10: memref<2x5xf32, #tpu.memory_space<vmem>>) attributes {dimension_semantics = [], scalar_prefetch = 0 : i64, scratch_operands = 0 : i64, tpu.core_type = #tpu.core_type<tc>} {
    %c0 = arith.constant 0 : index
    %c0_0 = arith.constant 0 : index
    %0 = vector.load %arg0[%c0, %c0_0] : memref<16x16xf32, #tpu.memory_space<vmem>>, vector<16x16xf32>
    %c0_1 = arith.constant 0 : index
    %c0_2 = arith.constant 0 : index
    %1 = vector.load %arg1[%c0_1, %c0_2] : memref<16x32xf32, #tpu.memory_space<vmem>>, vector<16x32xf32>
    %cst = arith.constant dense<0.000000e+00> : vector<16x32xf32>
    %2 = tpu.matmul %0, %1, %cst {dimension_numbers = #tpu.dot_dimension_numbers<[1], [0], [0], [1], [0, 0, 1, 1], [], []>} : vector<16x16xf32>, vector<16x32xf32>, vector<16x32xf32> -> vector<16x32xf32>
    %c0_3 = arith.constant 0 : index
    %c0_4 = arith.constant 0 : index
    %3 = vector.load %arg3[%c0_3, %c0_4] : memref<1x32xf32, #tpu.memory_space<vmem>>, vector<1x32xf32>
    %4 = vector.broadcast %3 : vector<1x32xf32> to vector<16x32xf32>
    %5 = arith.addf %2, %4 : vector<16x32xf32>
    %c0_5 = arith.constant 0 : index
    %c0_6 = arith.constant 0 : index
    %6 = vector.load %arg2[%c0_5, %c0_6] : memref<32x32xf32, #tpu.memory_space<vmem>>, vector<32x32xf32>
    %c0_7 = arith.constant 0 : index
    %c0_8 = arith.constant 0 : index
    %7 = vector.load %arg4[%c0_7, %c0_8] : memref<64x32xf32, #tpu.memory_space<vmem>>, vector<64x32xf32>
    %c0_9 = arith.constant 0 : index
    %c0_10 = arith.constant 0 : index
    %8 = vector.load %arg5[%c0_9, %c0_10] : memref<1x32xf32, #tpu.memory_space<vmem>>, vector<1x32xf32>
    %c0_11 = arith.constant 0 : index
    %c0_12 = arith.constant 0 : index
    %9 = vector.load %arg6[%c0_11, %c0_12] : memref<32x32xf32, #tpu.memory_space<vmem>>, vector<32x32xf32>
    %c0_13 = arith.constant 0 : index
    %c0_14 = arith.constant 0 : index
    %10 = vector.load %arg7[%c0_13, %c0_14] : memref<1x32xf32, #tpu.memory_space<vmem>>, vector<1x32xf32>
    %c0_15 = arith.constant 0 : index
    %c0_16 = arith.constant 0 : index
    %11 = vector.load %arg8[%c0_15, %c0_16] : memref<32x5xf32, #tpu.memory_space<vmem>>, vector<32x5xf32>
    %c0_17 = arith.constant 0 : index
    %c0_18 = arith.constant 0 : index
    %12 = vector.load %arg9[%c0_17, %c0_18] : memref<1x5xf32, #tpu.memory_space<vmem>>, vector<1x5xf32>
    %cst_19 = arith.constant 0.000000e+00 : f32
    %13 = vector.broadcast %cst_19 : f32 to vector<2x32xf32>
    %cst_20 = arith.constant 0.000000e+00 : f32
    %14 = vector.broadcast %cst_20 : f32 to vector<2x32xf32>
    %15 = vector.extract_strided_slice %5 {offsets = [0, 0], sizes = [2, 32], strides = [1, 1]} : vector<16x32xf32> to vector<2x32xf32>
    %cst_21 = arith.constant dense<0.000000e+00> : vector<2x32xf32>
    %16 = tpu.matmul %13, %6, %cst_21 {dimension_numbers = #tpu.dot_dimension_numbers<[1], [0], [0], [1], [0, 0, 1, 1], [], []>} : vector<2x32xf32>, vector<32x32xf32>, vector<2x32xf32> -> vector<2x32xf32>
    %17 = arith.addf %15, %16 : vector<2x32xf32>
    %18 = math.tanh %17 : vector<2x32xf32>
    %19 = tpu.concatenate %18, %14 in 1 : vector<2x32xf32>, vector<2x32xf32> -> vector<2x64xf32>
    %cst_22 = arith.constant dense<0.000000e+00> : vector<2x32xf32>
    %20 = tpu.matmul %19, %7, %cst_22 {dimension_numbers = #tpu.dot_dimension_numbers<[1], [0], [0], [1], [0, 0, 1, 1], [], []>} : vector<2x64xf32>, vector<64x32xf32>, vector<2x32xf32> -> vector<2x32xf32>
    %21 = vector.broadcast %8 : vector<1x32xf32> to vector<2x32xf32>
    %22 = arith.addf %20, %21 : vector<2x32xf32>
    %23 = math.tanh %22 : vector<2x32xf32>
    %24 = vector.extract_strided_slice %5 {offsets = [2, 0], sizes = [2, 32], strides = [1, 1]} : vector<16x32xf32> to vector<2x32xf32>
    %cst_23 = arith.constant dense<0.000000e+00> : vector<2x32xf32>
    %25 = tpu.matmul %18, %6, %cst_23 {dimension_numbers = #tpu.dot_dimension_numbers<[1], [0], [0], [1], [0, 0, 1, 1], [], []>} : vector<2x32xf32>, vector<32x32xf32>, vector<2x32xf32> -> vector<2x32xf32>
    %26 = arith.addf %24, %25 : vector<2x32xf32>
    %27 = math.tanh %26 : vector<2x32xf32>
    %28 = tpu.concatenate %27, %23 in 1 : vector<2x32xf32>, vector<2x32xf32> -> vector<2x64xf32>
    %cst_24 = arith.constant dense<0.000000e+00> : vector<2x32xf32>
    %29 = tpu.matmul %28, %7, %cst_24 {dimension_numbers = #tpu.dot_dimension_numbers<[1], [0], [0], [1], [0, 0, 1, 1], [], []>} : vector<2x64xf32>, vector<64x32xf32>, vector<2x32xf32> -> vector<2x32xf32>
    %30 = vector.broadcast %8 : vector<1x32xf32> to vector<2x32xf32>
    %31 = arith.addf %29, %30 : vector<2x32xf32>
    %32 = math.tanh %31 : vector<2x32xf32>
    %33 = vector.extract_strided_slice %5 {offsets = [4, 0], sizes = [2, 32], strides = [1, 1]} : vector<16x32xf32> to vector<2x32xf32>
    %cst_25 = arith.constant dense<0.000000e+00> : vector<2x32xf32>
    %34 = tpu.matmul %27, %6, %cst_25 {dimension_numbers = #tpu.dot_dimension_numbers<[1], [0], [0], [1], [0, 0, 1, 1], [], []>} : vector<2x32xf32>, vector<32x32xf32>, vector<2x32xf32> -> vector<2x32xf32>
    %35 = arith.addf %33, %34 : vector<2x32xf32>
    %36 = math.tanh %35 : vector<2x32xf32>
    %37 = tpu.concatenate %36, %32 in 1 : vector<2x32xf32>, vector<2x32xf32> -> vector<2x64xf32>
    %cst_26 = arith.constant dense<0.000000e+00> : vector<2x32xf32>
    %38 = tpu.matmul %37, %7, %cst_26 {dimension_numbers = #tpu.dot_dimension_numbers<[1], [0], [0], [1], [0, 0, 1, 1], [], []>} : vector<2x64xf32>, vector<64x32xf32>, vector<2x32xf32> -> vector<2x32xf32>
    %39 = vector.broadcast %8 : vector<1x32xf32> to vector<2x32xf32>
    %40 = arith.addf %38, %39 : vector<2x32xf32>
    %41 = math.tanh %40 : vector<2x32xf32>
    %42 = vector.extract_strided_slice %5 {offsets = [6, 0], sizes = [2, 32], strides = [1, 1]} : vector<16x32xf32> to vector<2x32xf32>
    %cst_27 = arith.constant dense<0.000000e+00> : vector<2x32xf32>
    %43 = tpu.matmul %36, %6, %cst_27 {dimension_numbers = #tpu.dot_dimension_numbers<[1], [0], [0], [1], [0, 0, 1, 1], [], []>} : vector<2x32xf32>, vector<32x32xf32>, vector<2x32xf32> -> vector<2x32xf32>
    %44 = arith.addf %42, %43 : vector<2x32xf32>
    %45 = math.tanh %44 : vector<2x32xf32>
    %46 = tpu.concatenate %45, %41 in 1 : vector<2x32xf32>, vector<2x32xf32> -> vector<2x64xf32>
    %cst_28 = arith.constant dense<0.000000e+00> : vector<2x32xf32>
    %47 = tpu.matmul %46, %7, %cst_28 {dimension_numbers = #tpu.dot_dimension_numbers<[1], [0], [0], [1], [0, 0, 1, 1], [], []>} : vector<2x64xf32>, vector<64x32xf32>, vector<2x32xf32> -> vector<2x32xf32>
    %48 = vector.broadcast %8 : vector<1x32xf32> to vector<2x32xf32>
    %49 = arith.addf %47, %48 : vector<2x32xf32>
    %50 = math.tanh %49 : vector<2x32xf32>
    %51 = vector.extract_strided_slice %5 {offsets = [8, 0], sizes = [2, 32], strides = [1, 1]} : vector<16x32xf32> to vector<2x32xf32>
    %cst_29 = arith.constant dense<0.000000e+00> : vector<2x32xf32>
    %52 = tpu.matmul %45, %6, %cst_29 {dimension_numbers = #tpu.dot_dimension_numbers<[1], [0], [0], [1], [0, 0, 1, 1], [], []>} : vector<2x32xf32>, vector<32x32xf32>, vector<2x32xf32> -> vector<2x32xf32>
    %53 = arith.addf %51, %52 : vector<2x32xf32>
    %54 = math.tanh %53 : vector<2x32xf32>
    %55 = tpu.concatenate %54, %50 in 1 : vector<2x32xf32>, vector<2x32xf32> -> vector<2x64xf32>
    %cst_30 = arith.constant dense<0.000000e+00> : vector<2x32xf32>
    %56 = tpu.matmul %55, %7, %cst_30 {dimension_numbers = #tpu.dot_dimension_numbers<[1], [0], [0], [1], [0, 0, 1, 1], [], []>} : vector<2x64xf32>, vector<64x32xf32>, vector<2x32xf32> -> vector<2x32xf32>
    %57 = vector.broadcast %8 : vector<1x32xf32> to vector<2x32xf32>
    %58 = arith.addf %56, %57 : vector<2x32xf32>
    %59 = math.tanh %58 : vector<2x32xf32>
    %60 = vector.extract_strided_slice %5 {offsets = [10, 0], sizes = [2, 32], strides = [1, 1]} : vector<16x32xf32> to vector<2x32xf32>
    %cst_31 = arith.constant dense<0.000000e+00> : vector<2x32xf32>
    %61 = tpu.matmul %54, %6, %cst_31 {dimension_numbers = #tpu.dot_dimension_numbers<[1], [0], [0], [1], [0, 0, 1, 1], [], []>} : vector<2x32xf32>, vector<32x32xf32>, vector<2x32xf32> -> vector<2x32xf32>
    %62 = arith.addf %60, %61 : vector<2x32xf32>
    %63 = math.tanh %62 : vector<2x32xf32>
    %64 = tpu.concatenate %63, %59 in 1 : vector<2x32xf32>, vector<2x32xf32> -> vector<2x64xf32>
    %cst_32 = arith.constant dense<0.000000e+00> : vector<2x32xf32>
    %65 = tpu.matmul %64, %7, %cst_32 {dimension_numbers = #tpu.dot_dimension_numbers<[1], [0], [0], [1], [0, 0, 1, 1], [], []>} : vector<2x64xf32>, vector<64x32xf32>, vector<2x32xf32> -> vector<2x32xf32>
    %66 = vector.broadcast %8 : vector<1x32xf32> to vector<2x32xf32>
    %67 = arith.addf %65, %66 : vector<2x32xf32>
    %68 = math.tanh %67 : vector<2x32xf32>
    %69 = vector.extract_strided_slice %5 {offsets = [12, 0], sizes = [2, 32], strides = [1, 1]} : vector<16x32xf32> to vector<2x32xf32>
    %cst_33 = arith.constant dense<0.000000e+00> : vector<2x32xf32>
    %70 = tpu.matmul %63, %6, %cst_33 {dimension_numbers = #tpu.dot_dimension_numbers<[1], [0], [0], [1], [0, 0, 1, 1], [], []>} : vector<2x32xf32>, vector<32x32xf32>, vector<2x32xf32> -> vector<2x32xf32>
    %71 = arith.addf %69, %70 : vector<2x32xf32>
    %72 = math.tanh %71 : vector<2x32xf32>
    %73 = tpu.concatenate %72, %68 in 1 : vector<2x32xf32>, vector<2x32xf32> -> vector<2x64xf32>
    %cst_34 = arith.constant dense<0.000000e+00> : vector<2x32xf32>
    %74 = tpu.matmul %73, %7, %cst_34 {dimension_numbers = #tpu.dot_dimension_numbers<[1], [0], [0], [1], [0, 0, 1, 1], [], []>} : vector<2x64xf32>, vector<64x32xf32>, vector<2x32xf32> -> vector<2x32xf32>
    %75 = vector.broadcast %8 : vector<1x32xf32> to vector<2x32xf32>
    %76 = arith.addf %74, %75 : vector<2x32xf32>
    %77 = math.tanh %76 : vector<2x32xf32>
    %78 = vector.extract_strided_slice %5 {offsets = [14, 0], sizes = [2, 32], strides = [1, 1]} : vector<16x32xf32> to vector<2x32xf32>
    %cst_35 = arith.constant dense<0.000000e+00> : vector<2x32xf32>
    %79 = tpu.matmul %72, %6, %cst_35 {dimension_numbers = #tpu.dot_dimension_numbers<[1], [0], [0], [1], [0, 0, 1, 1], [], []>} : vector<2x32xf32>, vector<32x32xf32>, vector<2x32xf32> -> vector<2x32xf32>
    %80 = arith.addf %78, %79 : vector<2x32xf32>
    %81 = math.tanh %80 : vector<2x32xf32>
    %82 = tpu.concatenate %81, %77 in 1 : vector<2x32xf32>, vector<2x32xf32> -> vector<2x64xf32>
    %cst_36 = arith.constant dense<0.000000e+00> : vector<2x32xf32>
    %83 = tpu.matmul %82, %7, %cst_36 {dimension_numbers = #tpu.dot_dimension_numbers<[1], [0], [0], [1], [0, 0, 1, 1], [], []>} : vector<2x64xf32>, vector<64x32xf32>, vector<2x32xf32> -> vector<2x32xf32>
    %84 = vector.broadcast %8 : vector<1x32xf32> to vector<2x32xf32>
    %85 = arith.addf %83, %84 : vector<2x32xf32>
    %86 = math.tanh %85 : vector<2x32xf32>
    %cst_37 = arith.constant dense<0.000000e+00> : vector<2x32xf32>
    %87 = tpu.matmul %86, %9, %cst_37 {dimension_numbers = #tpu.dot_dimension_numbers<[1], [0], [0], [1], [0, 0, 1, 1], [], []>} : vector<2x32xf32>, vector<32x32xf32>, vector<2x32xf32> -> vector<2x32xf32>
    %88 = vector.broadcast %10 : vector<1x32xf32> to vector<2x32xf32>
    %89 = arith.addf %87, %88 : vector<2x32xf32>
    %cst_38 = arith.constant 0.000000e+00 : f32
    %90 = vector.broadcast %cst_38 : f32 to vector<2x32xf32>
    %91 = arith.cmpf ogt, %89, %90 : vector<2x32xf32>
    %cst_39 = arith.constant 0.00999999977 : f32
    %92 = vector.broadcast %cst_39 : f32 to vector<2x32xf32>
    %93 = arith.mulf %92, %89 : vector<2x32xf32>
    %94 = arith.select %91, %89, %93 : vector<2x32xi1>, vector<2x32xf32>
    %cst_40 = arith.constant dense<0.000000e+00> : vector<2x5xf32>
    %95 = tpu.matmul %94, %11, %cst_40 {dimension_numbers = #tpu.dot_dimension_numbers<[1], [0], [0], [1], [0, 0, 1, 1], [], []>} : vector<2x32xf32>, vector<32x5xf32>, vector<2x5xf32> -> vector<2x5xf32>
    %96 = vector.broadcast %12 : vector<1x5xf32> to vector<2x5xf32>
    %97 = arith.addf %95, %96 : vector<2x5xf32>
    %c0_41 = arith.constant 0 : index
    %c0_42 = arith.constant 0 : index
    %98 = vector.load %arg10[%c0_41, %c0_42] : memref<2x5xf32, #tpu.memory_space<vmem>>, vector<2x5xf32>
    tpu.vector_store %arg10[%c0_41, %c0_42], %97 {strides = array<i32>} : memref<2x5xf32, #tpu.memory_space<vmem>>, vector<2x5xf32>,
    return
  }
}

</mosaic_0001>

<llo_original>
// kernel: tpu_custom_call.1
$region0: #{tpu_custom_call.1}
  #allocation0 [shape = 'u32[]', space=smem, size = 0x4, offset = 0x4, fixed_abs, tag = 'smem constant byte address 0x4 - core index']
  #allocation1 [shape = 'u32[144,128]{1,0:T(1,128)}', space=vmem, size = 0x12000, scoped, tag = 'internal scratch']
  %s0 = inlined_call_operand.vmem [shape: f32[16,16], index: 0, kind: input, shape index: {}]
  %s1 = inlined_call_operand.vmem [shape: f32[16,32], index: 1, kind: input, shape index: {}]
  %s2 = inlined_call_operand.vmem [shape: f32[32,32], index: 2, kind: input, shape index: {}]
  %s3 = inlined_call_operand.vmem [shape: f32[1,32], index: 3, kind: input, shape index: {}]
  %s4 = inlined_call_operand.vmem [shape: f32[64,32], index: 4, kind: input, shape index: {}]
  %s5 = inlined_call_operand.vmem [shape: f32[1,32], index: 5, kind: input, shape index: {}]
  %s6 = inlined_call_operand.vmem [shape: f32[32,32], index: 6, kind: input, shape index: {}]
  %s7 = inlined_call_operand.vmem [shape: f32[1,32], index: 7, kind: input, shape index: {}]
  %s8 = inlined_call_operand.vmem [shape: f32[32,5], index: 8, kind: input, shape index: {}]
  %s9 = inlined_call_operand.vmem [shape: f32[1,5], index: 9, kind: input, shape index: {}]
  %s10 = inlined_call_operand.hbm [shape: f32[2,5], index: 10, kind: output, shape index: {}]
  %s11 = sld [smem:[#allocation0]]
  $region50: #{tpu_custom_call.1} parent=0
    _
  %s13 = ssub.s32 1, %s11
  %s14 = scalar_select 0, %s13, %s11
  $region1: #{tpu_custom_call.1} parent=0
    #allocation2 [shape = 'u8[1024]{0}', space=vmem, size = 0x400, scoped, tag = 'output window, operand 0, single buffered']
    #allocation3 [shape = 's32[1]{0}', space=sflag, size = 0x4, scoped, tag = 'scoped memory for tpu_custom_call.1']
    %15 = vsyncpa [#allocation3], 0
    // Predicated region
    $region2: #{tpu_custom_call.1} parent=1 // pred_check
      _
    $region3: #{tpu_custom_call.1} parent=1 // pred_check_branch
      %17 = sbr.rel (0) target = $region5
    $region4: #{tpu_custom_call.1} parent=1 // pred_region
      _
    $region5: #{tpu_custom_call.1} parent=1 // pred_fallthru
      _
    // Predicated region
    $region6: #{tpu_custom_call.1} parent=1 // pred_check
      _
    $region7: #{tpu_custom_call.1} parent=1 // pred_check_branch
      %19 = sbr.rel (0) target = $region9
    $region8: #{tpu_custom_call.1} parent=1 // pred_region
      _
    $region9: #{tpu_custom_call.1} parent=1 // pred_fallthru
      _
    // Predicated region
    $region10: #{tpu_custom_call.1} parent=1 // pred_check
      _
    $region11: #{tpu_custom_call.1} parent=1 // pred_check_branch
      %21 = sbr.rel (0) target = $region13
    $region12: #{tpu_custom_call.1} parent=1 // pred_region
      _
    $region13: #{tpu_custom_call.1} parent=1 // pred_fallthru
      _
    // Predicated region
    $region14: #{tpu_custom_call.1} parent=1 // pred_check
      _
    $region15: #{tpu_custom_call.1} parent=1 // pred_check_branch
      %23 = sbr.rel (0) target = $region17
    $region16: #{tpu_custom_call.1} parent=1 // pred_region
      _
    $region17: #{tpu_custom_call.1} parent=1 // pred_fallthru
      _
    // Predicated region
    $region18: #{tpu_custom_call.1} parent=1 // pred_check
      _
    $region19: #{tpu_custom_call.1} parent=1 // pred_check_branch
      %25 = sbr.rel (0) target = $region21
    $region20: #{tpu_custom_call.1} parent=1 // pred_region
      _
    $region21: #{tpu_custom_call.1} parent=1 // pred_fallthru
      _
    // Predicated region
    $region22: #{tpu_custom_call.1} parent=1 // pred_check
      _
    $region23: #{tpu_custom_call.1} parent=1 // pred_check_branch
      %27 = sbr.rel (0) target = $region25
    $region24: #{tpu_custom_call.1} parent=1 // pred_region
      _
    $region25: #{tpu_custom_call.1} parent=1 // pred_fallthru
      _
    // Predicated region
    $region26: #{tpu_custom_call.1} parent=1 // pred_check
      _
    $region27: #{tpu_custom_call.1} parent=1 // pred_check_branch
      %29 = sbr.rel (0) target = $region29
    $region28: #{tpu_custom_call.1} parent=1 // pred_region
      _
    $region29: #{tpu_custom_call.1} parent=1 // pred_fallthru
      _
    // Predicated region
    $region30: #{tpu_custom_call.1} parent=1 // pred_check
      _
    $region31: #{tpu_custom_call.1} parent=1 // pred_check_branch
      %31 = sbr.rel (0) target = $region33
    $region32: #{tpu_custom_call.1} parent=1 // pred_region
      _
    $region33: #{tpu_custom_call.1} parent=1 // pred_fallthru
      _
    // Predicated region
    $region34: #{tpu_custom_call.1} parent=1 // pred_check
      _
    $region35: #{tpu_custom_call.1} parent=1 // pred_check_branch
      %33 = sbr.rel (0) target = $region37
    $region36: #{tpu_custom_call.1} parent=1 // pred_region
      _
    $region37: #{tpu_custom_call.1} parent=1 // pred_fallthru
      _
    // Predicated region
    $region38: #{tpu_custom_call.1} parent=1 // pred_check
      _
    $region39: #{tpu_custom_call.1} parent=1 // pred_check_branch
      %35 = sbr.rel (0) target = $region41
    $region40: #{tpu_custom_call.1} parent=1 // pred_region
      _
    $region41: #{tpu_custom_call.1} parent=1 // pred_fallthru
      _
    %v36 = vld [vmem:[%s0] sm:$0xff]
    %v37 = vld [vmem:[%s0 + $0x8] sm:$0xff]
    %v38 = vld [vmem:[%s1] sm:$0xff]
    %v39 = vld [vmem:[%s1 + $0x8] sm:$0xff]
    %v40 = vld [vmem:[%s3] sm:$0x1]
    %v42 = vlaneseq
    %v43 = vshrl.u32 %v42, 7
    %v44 = vsub.s32 0, %v43
    %v45 = vrot.slane %v40, %v44
    %vm47 = vcmask 130048
    %v49 = vsel %vm47, %v36, 0
    %v52 = vsel %vm47, %v37, 0
    %54 = vmatprep.subr.mxu0 0.0
    %55 = vmatpush1.msra.mxu0 0.0
    %56 = vmatprep.subr.mxu0 0.0
    %57 = vmatpush1.msra.mxu0 0.0
    %58 = vmatprep.subr.mxu0 0.0
    %59 = vmatpush1.msra.mxu0 0.0
    %60 = vmatprep.subr.mxu0 0.0
    %61 = vmatpush1.msra.mxu0 0.0
    %62 = vmatprep.subr.mxu0 0.0
    %63 = vmatpush1.msra.mxu0 0.0
    %64 = vmatprep.subr.mxu0 0.0
    %65 = vmatpush1.msra.mxu0 0.0
    %66 = vmatprep.subr.mxu0 0.0
    %67 = vmatpush1.msra.mxu0 0.0
    %68 = vmatprep.subr.mxu0 0.0
    %69 = vmatpush1.msra.mxu0 0.0
    %70 = vmatprep.subr.mxu0 0.0
    %71 = vmatpush1.msra.mxu0 0.0
    %72 = vmatprep.subr.mxu0 0.0
    %73 = vmatpush1.msra.mxu0 0.0
    %74 = vmatprep.subr.mxu0 0.0
    %75 = vmatpush1.msra.mxu0 0.0
    %76 = vmatprep.subr.mxu0 0.0
    %77 = vmatpush1.msra.mxu0 0.0
    %78 = vmatprep.subr.mxu0 0.0
    %79 = vmatpush1.msra.mxu0 0.0
    %80 = vmatprep.subr.mxu0 0.0
    %81 = vmatpush1.msra.mxu0 0.0
    %82 = vmatprep.subr.mxu0 0.0
    %83 = vmatpush1.msra.mxu0 %v39
    %84 = vmatprep.subr.mxu0 0.0
    %85 = vmatpush1.msra.mxu0 %v38
    %86 = vmatprep.subr.mxu0 0.0
    %87 = vmatpush2.msra.mxu0 0.0
    %88 = vmatprep.subr.mxu0 0.0
    %89 = vmatpush2.msra.mxu0 0.0
    %90 = vmatprep.subr.mxu0 0.0
    %91 = vmatpush2.msra.mxu0 0.0
    %92 = vmatprep.subr.mxu0 0.0
    %93 = vmatpush2.msra.mxu0 0.0
    %94 = vmatprep.subr.mxu0 0.0
    %95 = vmatpush2.msra.mxu0 0.0
    %96 = vmatprep.subr.mxu0 0.0
    %97 = vmatpush2.msra.mxu0 0.0
    %98 = vmatprep.subr.mxu0 0.0
    %99 = vmatpush2.msra.mxu0 0.0
    %100 = vmatprep.subr.mxu0 0.0
    %101 = vmatpush2.msra.mxu0 0.0
    %102 = vmatprep.subr.mxu0 0.0
    %103 = vmatpush2.msra.mxu0 0.0
    %104 = vmatprep.subr.mxu0 0.0
    %105 = vmatpush2.msra.mxu0 0.0
    %106 = vmatprep.subr.mxu0 0.0
    %107 = vmatpush2.msra.mxu0 0.0
    %108 = vmatprep.subr.mxu0 0.0
    %109 = vmatpush2.msra.mxu0 0.0
    %110 = vmatprep.subr.mxu0 0.0
    %111 = vmatpush2.msra.mxu0 0.0
    %112 = vmatprep.subr.mxu0 0.0
    %113 = vmatpush2.msra.mxu0 0.0
    %114 = vmatprep.subr.mxu0 0.0
    %115 = vmatpush2.msra.mxu0 0.0
    %116 = vmatprep.subr.mxu0 0.0
    %117 = vmatpush2.msra.mxu0 0.0
    %118 = vmatprep.mubr.f32.mxu0 0.0
    %119 = vmatmul.mubr.f32.gmra.mxu0 %v49
    %v120 = vpop.f32.mrf.mxu0
    %v121 = vadd.f32 %v45, %v120
    %v122 = vpop.f32.mrf.mxu0
    %123 = vmatprep.mubr.f32.mxu0 0.0
    %124 = vmatmul.mubr.f32.gmra.mxu0 %v52
    %v125 = vpop.f32.mrf.mxu0
    %v126 = vadd.f32 %v45, %v125
    %v127 = vpop.f32.mrf.mxu0
    %128 = vdwg.mxu0
    %v129 = vld [vmem:[%s2] sm:$0xff]
    %v130 = vld [vmem:[%s2 + $0x8] sm:$0xff]
    %v131 = vld [vmem:[%s2 + $0x10] sm:$0xff]
    %v132 = vld [vmem:[%s2 + $0x18] sm:$0xff]
    %v133 = vld [vmem:[%s4] sm:$0xff]
    %v134 = vld [vmem:[%s4 + $0x8] sm:$0xff]
    %v135 = vld [vmem:[%s4 + $0x10] sm:$0xff]
    %v136 = vld [vmem:[%s4 + $0x18] sm:$0xff]
    %v137 = vld [vmem:[%s4 + $0x20] sm:$0xff]
    %v138 = vld [vmem:[%s4 + $0x28] sm:$0xff]
    %v139 = vld [vmem:[%s4 + $0x30] sm:$0xff]
    %v140 = vld [vmem:[%s4 + $0x38] sm:$0xff]
    %v141 = vld [vmem:[%s5] sm:$0x1]
    %v142 = vld [vmem:[%s6] sm:$0xff]
    %v143 = vld [vmem:[%s6 + $0x8] sm:$0xff]
    %v144 = vld [vmem:[%s6 + $0x10] sm:$0xff]
    %v145 = vld [vmem:[%s6 + $0x18] sm:$0xff]
    %v146 = vld [vmem:[%s7] sm:$0x1]
    %v147 = vld [vmem:[%s8] sm:$0xff]
    %v148 = vld [vmem:[%s8 + $0x8] sm:$0xff]
    %v149 = vld [vmem:[%s8 + $0x10] sm:$0xff]
    %v150 = vld [vmem:[%s8 + $0x18] sm:$0xff]
    %v151 = vld [vmem:[%s9] sm:$0x1]
    %vm152 = vcmask 261120
    %v154 = vsel %vm152, 0.0, 0
    %156 = vmatprep.subr.mxu0 0.0
    %157 = vmatpush1.msra.mxu0 0.0
    %158 = vmatprep.subr.mxu0 0.0
    %159 = vmatpush1.msra.mxu0 0.0
    %160 = vmatprep.subr.mxu0 0.0
    %161 = vmatpush1.msra.mxu0 0.0
    %162 = vmatprep.subr.mxu0 0.0
    %163 = vmatpush1.msra.mxu0 0.0
    %164 = vmatprep.subr.mxu0 0.0
    %165 = vmatpush1.msra.mxu0 0.0
    %166 = vmatprep.subr.mxu0 0.0
    %167 = vmatpush1.msra.mxu0 0.0
    %168 = vmatprep.subr.mxu0 0.0
    %169 = vmatpush1.msra.mxu0 0.0
    %170 = vmatprep.subr.mxu0 0.0
    %171 = vmatpush1.msra.mxu0 0.0
    %172 = vmatprep.subr.mxu0 0.0
    %173 = vmatpush1.msra.mxu0 0.0
    %174 = vmatprep.subr.mxu0 0.0
    %175 = vmatpush1.msra.mxu0 0.0
    %176 = vmatprep.subr.mxu0 0.0
    %177 = vmatpush1.msra.mxu0 0.0
    %178 = vmatprep.subr.mxu0 0.0
    %179 = vmatpush1.msra.mxu0 0.0
    %180 = vmatprep.subr.mxu0 0.0
    %181 = vmatpush1.msra.mxu0 %v132
    %182 = vmatprep.subr.mxu0 0.0
    %183 = vmatpush1.msra.mxu0 %v131
    %184 = vmatprep.subr.mxu0 0.0
    %185 = vmatpush1.msra.mxu0 %v130
    %186 = vmatprep.subr.mxu0 0.0
    %187 = vmatpush1.msra.mxu0 %v129
    %188 = vmatprep.subr.mxu0 0.0
    %189 = vmatpush2.msra.mxu0 0.0
    %190 = vmatprep.subr.mxu0 0.0
    %191 = vmatpush2.msra.mxu0 0.0
    %192 = vmatprep.subr.mxu0 0.0
    %193 = vmatpush2.msra.mxu0 0.0
    %194 = vmatprep.subr.mxu0 0.0
    %195 = vmatpush2.msra.mxu0 0.0
    %196 = vmatprep.subr.mxu0 0.0
    %197 = vmatpush2.msra.mxu0 0.0
    %198 = vmatprep.subr.mxu0 0.0
    %199 = vmatpush2.msra.mxu0 0.0
    %200 = vmatprep.subr.mxu0 0.0
    %201 = vmatpush2.msra.mxu0 0.0
    %202 = vmatprep.subr.mxu0 0.0
    %203 = vmatpush2.msra.mxu0 0.0
    %204 = vmatprep.subr.mxu0 0.0
    %205 = vmatpush2.msra.mxu0 0.0
    %206 = vmatprep.subr.mxu0 0.0
    %207 = vmatpush2.msra.mxu0 0.0
    %208 = vmatprep.subr.mxu0 0.0
    %209 = vmatpush2.msra.mxu0 0.0
    %210 = vmatprep.subr.mxu0 0.0
    %211 = vmatpush2.msra.mxu0 0.0
    %212 = vmatprep.subr.mxu0 0.0
    %213 = vmatpush2.msra.mxu0 0.0
    %214 = vmatprep.subr.mxu0 0.0
    %215 = vmatpush2.msra.mxu0 0.0
    %216 = vmatprep.subr.mxu0 0.0
    %217 = vmatpush2.msra.mxu0 0.0
    %218 = vmatprep.subr.mxu0 0.0
    %219 = vmatpush2.msra.mxu0 0.0
    %220 = vmatprep.mubr.f32.mxu0 0.0
    %221 = vmatmul.mubr.f32.gmra.mxu0 %v154
    %v222 = vpop.f32.mrf.mxu0
    %v223 = vadd.f32 0.0, %v222
    %v224 = vpop.f32.mrf.mxu0
    %225 = vdwg.mxu0
    %v226 = vadd.f32 %v121, %v223
    %v227 = vtanh.pop %v226
    %v228 = vsel %vm152, %v227, 0.0
    %v230 = vlaneseq
    %v231 = vshrl.u32 %v230, 7
    %v232 = vsub.s32 0, %v231
    %v233 = vrot.slane %v141, %v232
    %vm235 = vcmask 523264
    %v237 = vsel %vm235, %v228, 0
    %239 = vmatprep.subr.mxu0 0.0
    %240 = vmatpush1.msra.mxu0 0.0
    %241 = vmatprep.subr.mxu0 0.0
    %242 = vmatpush1.msra.mxu0 0.0
    %243 = vmatprep.subr.mxu0 0.0
    %244 = vmatpush1.msra.mxu0 0.0
    %245 = vmatprep.subr.mxu0 0.0
    %246 = vmatpush1.msra.mxu0 0.0
    %247 = vmatprep.subr.mxu0 0.0
    %248 = vmatpush1.msra.mxu0 0.0
    %249 = vmatprep.subr.mxu0 0.0
    %250 = vmatpush1.msra.mxu0 0.0
    %251 = vmatprep.subr.mxu0 0.0
    %252 = vmatpush1.msra.mxu0 0.0
    %253 = vmatprep.subr.mxu0 0.0
    %254 = vmatpush1.msra.mxu0 0.0
    %255 = vmatprep.subr.mxu0 0.0
    %256 = vmatpush1.msra.mxu0 %v140
    %257 = vmatprep.subr.mxu0 0.0
    %258 = vmatpush1.msra.mxu0 %v139
    %259 = vmatprep.subr.mxu0 0.0
    %260 = vmatpush1.msra.mxu0 %v138
    %261 = vmatprep.subr.mxu0 0.0
    %262 = vmatpush1.msra.mxu0 %v137
    %263 = vmatprep.subr.mxu0 0.0
    %264 = vmatpush1.msra.mxu0 %v136
    %265 = vmatprep.subr.mxu0 0.0
    %266 = vmatpush1.msra.mxu0 %v135
    %267 = vmatprep.subr.mxu0 0.0
    %268 = vmatpush1.msra.mxu0 %v134
    %269 = vmatprep.subr.mxu0 0.0
    %270 = vmatpush1.msra.mxu0 %v133
    %271 = vmatprep.subr.mxu0 0.0
    %272 = vmatpush2.msra.mxu0 0.0
    %273 = vmatprep.subr.mxu0 0.0
    %274 = vmatpush2.msra.mxu0 0.0
    %275 = vmatprep.subr.mxu0 0.0
    %276 = vmatpush2.msra.mxu0 0.0
    %277 = vmatprep.subr.mxu0 0.0
    %278 = vmatpush2.msra.mxu0 0.0
    %279 = vmatprep.subr.mxu0 0.0
    %280 = vmatpush2.msra.mxu0 0.0
    %281 = vmatprep.subr.mxu0 0.0
    %282 = vmatpush2.msra.mxu0 0.0
    %283 = vmatprep.subr.mxu0 0.0
    %284 = vmatpush2.msra.mxu0 0.0
    %285 = vmatprep.subr.mxu0 0.0
    %286 = vmatpush2.msra.mxu0 0.0
    %287 = vmatprep.subr.mxu0 0.0
    %288 = vmatpush2.msra.mxu0 0.0
    %289 = vmatprep.subr.mxu0 0.0
    %290 = vmatpush2.msra.mxu0 0.0
    %291 = vmatprep.subr.mxu0 0.0
    %292 = vmatpush2.msra.mxu0 0.0
    %293 = vmatprep.subr.mxu0 0.0
    %294 = vmatpush2.msra.mxu0 0.0
    %295 = vmatprep.subr.mxu0 0.0
    %296 = vmatpush2.msra.mxu0 0.0
    %297 = vmatprep.subr.mxu0 0.0
    %298 = vmatpush2.msra.mxu0 0.0
    %299 = vmatprep.subr.mxu0 0.0
    %300 = vmatpush2.msra.mxu0 0.0
    %301 = vmatprep.subr.mxu0 0.0
    %302 = vmatpush2.msra.mxu0 0.0
    %303 = vmatprep.mubr.f32.mxu0 0.0
    %304 = vmatmul.mubr.f32.gmra.mxu0 %v237
    %v305 = vpop.f32.mrf.mxu0
    %v306 = vadd.f32 %v233, %v305
    %v307 = vpop.f32.mrf.mxu0
    %308 = vdwg.mxu0
    %v309 = vtanh.pop %v306
    %v311 = vsel %vm152, %v227, 0
    %313 = vmatprep.subr.mxu0 0.0
    %314 = vmatpush1.msra.mxu0 0.0
    %315 = vmatprep.subr.mxu0 0.0
    %316 = vmatpush1.msra.mxu0 0.0
    %317 = vmatprep.subr.mxu0 0.0
    %318 = vmatpush1.msra.mxu0 0.0
    %319 = vmatprep.subr.mxu0 0.0
    %320 = vmatpush1.msra.mxu0 0.0
    %321 = vmatprep.subr.mxu0 0.0
    %322 = vmatpush1.msra.mxu0 0.0
    %323 = vmatprep.subr.mxu0 0.0
    %324 = vmatpush1.msra.mxu0 0.0
    %325 = vmatprep.subr.mxu0 0.0
    %326 = vmatpush1.msra.mxu0 0.0
    %327 = vmatprep.subr.mxu0 0.0
    %328 = vmatpush1.msra.mxu0 0.0
    %329 = vmatprep.subr.mxu0 0.0
    %330 = vmatpush1.msra.mxu0 0.0
    %331 = vmatprep.subr.mxu0 0.0
    %332 = vmatpush1.msra.mxu0 0.0
    %333 = vmatprep.subr.mxu0 0.0
    %334 = vmatpush1.msra.mxu0 0.0
    %335 = vmatprep.subr.mxu0 0.0
    %336 = vmatpush1.msra.mxu0 0.0
    %337 = vmatprep.subr.mxu0 0.0
    %338 = vmatpush1.msra.mxu0 %v132
    %339 = vmatprep.subr.mxu0 0.0
    %340 = vmatpush1.msra.mxu0 %v131
    %341 = vmatprep.subr.mxu0 0.0
    %342 = vmatpush1.msra.mxu0 %v130
    %343 = vmatprep.subr.mxu0 0.0
    %344 = vmatpush1.msra.mxu0 %v129
    %345 = vmatprep.subr.mxu0 0.0
    %346 = vmatpush2.msra.mxu0 0.0
    %347 = vmatprep.subr.mxu0 0.0
    %348 = vmatpush2.msra.mxu0 0.0
    %349 = vmatprep.subr.mxu0 0.0
    %350 = vmatpush2.msra.mxu0 0.0
    %351 = vmatprep.subr.mxu0 0.0
    %352 = vmatpush2.msra.mxu0 0.0
    %353 = vmatprep.subr.mxu0 0.0
    %354 = vmatpush2.msra.mxu0 0.0
    %355 = vmatprep.subr.mxu0 0.0
    %356 = vmatpush2.msra.mxu0 0.0
    %357 = vmatprep.subr.mxu0 0.0
    %358 = vmatpush2.msra.mxu0 0.0
    %359 = vmatprep.subr.mxu0 0.0
    %360 = vmatpush2.msra.mxu0 0.0
    %361 = vmatprep.subr.mxu0 0.0
    %362 = vmatpush2.msra.mxu0 0.0
    %363 = vmatprep.subr.mxu0 0.0
    %364 = vmatpush2.msra.mxu0 0.0
    %365 = vmatprep.subr.mxu0 0.0
    %366 = vmatpush2.msra.mxu0 0.0
    %367 = vmatprep.subr.mxu0 0.0
    %368 = vmatpush2.msra.mxu0 0.0
    %369 = vmatprep.subr.mxu0 0.0
    %370 = vmatpush2.msra.mxu0 0.0
    %371 = vmatprep.subr.mxu0 0.0
    %372 = vmatpush2.msra.mxu0 0.0
    %373 = vmatprep.subr.mxu0 0.0
    %374 = vmatpush2.msra.mxu0 0.0
    %375 = vmatprep.subr.mxu0 0.0
    %376 = vmatpush2.msra.mxu0 0.0
    %377 = vmatprep.mubr.f32.mxu0 0.0
    %378 = vmatmul.mubr.f32.gmra.mxu0 %v311
    %v379 = vpop.f32.mrf.mxu0
    %v380 = vadd.f32 0.0, %v379
    %v381 = vpop.f32.mrf.mxu0
    %382 = vdwg.mxu0
    %v384 = vrot.slane %v380, 6
    %v386 = vadd.f32 %v121, %v384
    %v387 = vtanh.pop %v386
    %v389 = vrot.slane %v309, 6
    %390 = vrot.lane.b32.xlu0 %v389, 32
    %v391 = vpop.permute.xlu0 %390
    %v393 = vsel %vm152, %v387, %v391
    %v395 = vrot.slane %v393, 2
    %v396 = vsel %vm235, %v395, 0
    %398 = vmatprep.subr.mxu0 0.0
    %399 = vmatpush1.msra.mxu0 0.0
    %400 = vmatprep.subr.mxu0 0.0
    %401 = vmatpush1.msra.mxu0 0.0
    %402 = vmatprep.subr.mxu0 0.0
    %403 = vmatpush1.msra.mxu0 0.0
    %404 = vmatprep.subr.mxu0 0.0
    %405 = vmatpush1.msra.mxu0 0.0
    %406 = vmatprep.subr.mxu0 0.0
    %407 = vmatpush1.msra.mxu0 0.0
    %408 = vmatprep.subr.mxu0 0.0
    %409 = vmatpush1.msra.mxu0 0.0
    %410 = vmatprep.subr.mxu0 0.0
    %411 = vmatpush1.msra.mxu0 0.0
    %412 = vmatprep.subr.mxu0 0.0
    %413 = vmatpush1.msra.mxu0 0.0
    %414 = vmatprep.subr.mxu0 0.0
    %415 = vmatpush1.msra.mxu0 %v140
    %416 = vmatprep.subr.mxu0 0.0
    %417 = vmatpush1.msra.mxu0 %v139
    %418 = vmatprep.subr.mxu0 0.0
    %419 = vmatpush1.msra.mxu0 %v138
    %420 = vmatprep.subr.mxu0 0.0
    %421 = vmatpush1.msra.mxu0 %v137
    %422 = vmatprep.subr.mxu0 0.0
    %423 = vmatpush1.msra.mxu0 %v136
    %424 = vmatprep.subr.mxu0 0.0
    %425 = vmatpush1.msra.mxu0 %v135
    %426 = vmatprep.subr.mxu0 0.0
    %427 = vmatpush1.msra.mxu0 %v134
    %428 = vmatprep.subr.mxu0 0.0
    %429 = vmatpush1.msra.mxu0 %v133
    %430 = vmatprep.subr.mxu0 0.0
    %431 = vmatpush2.msra.mxu0 0.0
    %432 = vmatprep.subr.mxu0 0.0
    %433 = vmatpush2.msra.mxu0 0.0
    %434 = vmatprep.subr.mxu0 0.0
    %435 = vmatpush2.msra.mxu0 0.0
    %436 = vmatprep.subr.mxu0 0.0
    %437 = vmatpush2.msra.mxu0 0.0
    %438 = vmatprep.subr.mxu0 0.0
    %439 = vmatpush2.msra.mxu0 0.0
    %440 = vmatprep.subr.mxu0 0.0
    %441 = vmatpush2.msra.mxu0 0.0
    %442 = vmatprep.subr.mxu0 0.0
    %443 = vmatpush2.msra.mxu0 0.0
    %444 = vmatprep.subr.mxu0 0.0
    %445 = vmatpush2.msra.mxu0 0.0
    %446 = vmatprep.subr.mxu0 0.0
    %447 = vmatpush2.msra.mxu0 0.0
    %448 = vmatprep.subr.mxu0 0.0
    %449 = vmatpush2.msra.mxu0 0.0
    %450 = vmatprep.subr.mxu0 0.0
    %451 = vmatpush2.msra.mxu0 0.0
    %452 = vmatprep.subr.mxu0 0.0
    %453 = vmatpush2.msra.mxu0 0.0
    %454 = vmatprep.subr.mxu0 0.0
    %455 = vmatpush2.msra.mxu0 0.0
    %456 = vmatprep.subr.mxu0 0.0
    %457 = vmatpush2.msra.mxu0 0.0
    %458 = vmatprep.subr.mxu0 0.0
    %459 = vmatpush2.msra.mxu0 0.0
    %460 = vmatprep.subr.mxu0 0.0
    %461 = vmatpush2.msra.mxu0 0.0
    %462 = vmatprep.mubr.f32.mxu0 0.0
    %463 = vmatmul.mubr.f32.gmra.mxu0 %v396
    %v464 = vpop.f32.mrf.mxu0
    %v465 = vadd.f32 %v233, %v464
    %v466 = vpop.f32.mrf.mxu0
    %467 = vdwg.mxu0
    %v468 = vtanh.pop %v465
    %v470 = vrot.slane %v387, 2
    %v471 = vsel %vm152, %v470, 0
    %473 = vmatprep.subr.mxu0 0.0
    %474 = vmatpush1.msra.mxu0 0.0
    %475 = vmatprep.subr.mxu0 0.0
    %476 = vmatpush1.msra.mxu0 0.0
    %477 = vmatprep.subr.mxu0 0.0
    %478 = vmatpush1.msra.mxu0 0.0
    %479 = vmatprep.subr.mxu0 0.0
    %480 = vmatpush1.msra.mxu0 0.0
    %481 = vmatprep.subr.mxu0 0.0
    %482 = vmatpush1.msra.mxu0 0.0
    %483 = vmatprep.subr.mxu0 0.0
    %484 = vmatpush1.msra.mxu0 0.0
    %485 = vmatprep.subr.mxu0 0.0
    %486 = vmatpush1.msra.mxu0 0.0
    %487 = vmatprep.subr.mxu0 0.0
    %488 = vmatpush1.msra.mxu0 0.0
    %489 = vmatprep.subr.mxu0 0.0
    %490 = vmatpush1.msra.mxu0 0.0
    %491 = vmatprep.subr.mxu0 0.0
    %492 = vmatpush1.msra.mxu0 0.0
    %493 = vmatprep.subr.mxu0 0.0
    %494 = vmatpush1.msra.mxu0 0.0
    %495 = vmatprep.subr.mxu0 0.0
    %496 = vmatpush1.msra.mxu0 0.0
    %497 = vmatprep.subr.mxu0 0.0
    %498 = vmatpush1.msra.mxu0 %v132
    %499 = vmatprep.subr.mxu0 0.0
    %500 = vmatpush1.msra.mxu0 %v131
    %501 = vmatprep.subr.mxu0 0.0
    %502 = vmatpush1.msra.mxu0 %v130
    %503 = vmatprep.subr.mxu0 0.0
    %504 = vmatpush1.msra.mxu0 %v129
    %505 = vmatprep.subr.mxu0 0.0
    %506 = vmatpush2.msra.mxu0 0.0
    %507 = vmatprep.subr.mxu0 0.0
    %508 = vmatpush2.msra.mxu0 0.0
    %509 = vmatprep.subr.mxu0 0.0
    %510 = vmatpush2.msra.mxu0 0.0
    %511 = vmatprep.subr.mxu0 0.0
    %512 = vmatpush2.msra.mxu0 0.0
    %513 = vmatprep.subr.mxu0 0.0
    %514 = vmatpush2.msra.mxu0 0.0
    %515 = vmatprep.subr.mxu0 0.0
    %516 = vmatpush2.msra.mxu0 0.0
    %517 = vmatprep.subr.mxu0 0.0
    %518 = vmatpush2.msra.mxu0 0.0
    %519 = vmatprep.subr.mxu0 0.0
    %520 = vmatpush2.msra.mxu0 0.0
    %521 = vmatprep.subr.mxu0 0.0
    %522 = vmatpush2.msra.mxu0 0.0
    %523 = vmatprep.subr.mxu0 0.0
    %524 = vmatpush2.msra.mxu0 0.0
    %525 = vmatprep.subr.mxu0 0.0
    %526 = vmatpush2.msra.mxu0 0.0
    %527 = vmatprep.subr.mxu0 0.0
    %528 = vmatpush2.msra.mxu0 0.0
    %529 = vmatprep.subr.mxu0 0.0
    %530 = vmatpush2.msra.mxu0 0.0
    %531 = vmatprep.subr.mxu0 0.0
    %532 = vmatpush2.msra.mxu0 0.0
    %533 = vmatprep.subr.mxu0 0.0
    %534 = vmatpush2.msra.mxu0 0.0
    %535 = vmatprep.subr.mxu0 0.0
    %536 = vmatpush2.msra.mxu0 0.0
    %537 = vmatprep.mubr.f32.mxu0 0.0
    %538 = vmatmul.mubr.f32.gmra.mxu0 %v471
    %v539 = vpop.f32.mrf.mxu0
    %v540 = vadd.f32 0.0, %v539
    %v541 = vpop.f32.mrf.mxu0
    %542 = vdwg.mxu0
    %v544 = vrot.slane %v540, 4
    %v546 = vadd.f32 %v121, %v544
    %v547 = vtanh.pop %v546
    %v549 = vrot.slane %v468, 4
    %550 = vrot.lane.b32.xlu0 %v549, 32
    %v551 = vpop.permute.xlu0 %550
    %v553 = vsel %vm152, %v547, %v551
    %v555 = vrot.slane %v553, 4
    %v556 = vsel %vm235, %v555, 0
    %558 = vmatprep.subr.mxu0 0.0
    %559 = vmatpush1.msra.mxu0 0.0
    %560 = vmatprep.subr.mxu0 0.0
    %561 = vmatpush1.msra.mxu0 0.0
    %562 = vmatprep.subr.mxu0 0.0
    %563 = vmatpush1.msra.mxu0 0.0
    %564 = vmatprep.subr.mxu0 0.0
    %565 = vmatpush1.msra.mxu0 0.0
    %566 = vmatprep.subr.mxu0 0.0
    %567 = vmatpush1.msra.mxu0 0.0
    %568 = vmatprep.subr.mxu0 0.0
    %569 = vmatpush1.msra.mxu0 0.0
    %570 = vmatprep.subr.mxu0 0.0
    %571 = vmatpush1.msra.mxu0 0.0
    %572 = vmatprep.subr.mxu0 0.0
    %573 = vmatpush1.msra.mxu0 0.0
    %574 = vmatprep.subr.mxu0 0.0
    %575 = vmatpush1.msra.mxu0 %v140
    %576 = vmatprep.subr.mxu0 0.0
    %577 = vmatpush1.msra.mxu0 %v139
    %578 = vmatprep.subr.mxu0 0.0
    %579 = vmatpush1.msra.mxu0 %v138
    %580 = vmatprep.subr.mxu0 0.0
    %581 = vmatpush1.msra.mxu0 %v137
    %582 = vmatprep.subr.mxu0 0.0
    %583 = vmatpush1.msra.mxu0 %v136
    %584 = vmatprep.subr.mxu0 0.0
    %585 = vmatpush1.msra.mxu0 %v135
    %586 = vmatprep.subr.mxu0 0.0
    %587 = vmatpush1.msra.mxu0 %v134
    %588 = vmatprep.subr.mxu0 0.0
    %589 = vmatpush1.msra.mxu0 %v133
    %590 = vmatprep.subr.mxu0 0.0
    %591 = vmatpush2.msra.mxu0 0.0
    %592 = vmatprep.subr.mxu0 0.0
    %593 = vmatpush2.msra.mxu0 0.0
    %594 = vmatprep.subr.mxu0 0.0
    %595 = vmatpush2.msra.mxu0 0.0
    %596 = vmatprep.subr.mxu0 0.0
    %597 = vmatpush2.msra.mxu0 0.0
    %598 = vmatprep.subr.mxu0 0.0
    %599 = vmatpush2.msra.mxu0 0.0
    %600 = vmatprep.subr.mxu0 0.0
    %601 = vmatpush2.msra.mxu0 0.0
    %602 = vmatprep.subr.mxu0 0.0
    %603 = vmatpush2.msra.mxu0 0.0
    %604 = vmatprep.subr.mxu0 0.0
    %605 = vmatpush2.msra.mxu0 0.0
    %606 = vmatprep.subr.mxu0 0.0
    %607 = vmatpush2.msra.mxu0 0.0
    %608 = vmatprep.subr.mxu0 0.0
    %609 = vmatpush2.msra.mxu0 0.0
    %610 = vmatprep.subr.mxu0 0.0
    %611 = vmatpush2.msra.mxu0 0.0
    %612 = vmatprep.subr.mxu0 0.0
    %613 = vmatpush2.msra.mxu0 0.0
    %614 = vmatprep.subr.mxu0 0.0
    %615 = vmatpush2.msra.mxu0 0.0
    %616 = vmatprep.subr.mxu0 0.0
    %617 = vmatpush2.msra.mxu0 0.0
    %618 = vmatprep.subr.mxu0 0.0
    %619 = vmatpush2.msra.mxu0 0.0
    %620 = vmatprep.subr.mxu0 0.0
    %621 = vmatpush2.msra.mxu0 0.0
    %622 = vmatprep.mubr.f32.mxu0 0.0
    %623 = vmatmul.mubr.f32.gmra.mxu0 %v556
    %v624 = vpop.f32.mrf.mxu0
    %v625 = vadd.f32 %v233, %v624
    %v626 = vpop.f32.mrf.mxu0
    %627 = vdwg.mxu0
    %v628 = vtanh.pop %v625
    %v630 = vrot.slane %v547, 4
    %v631 = vsel %vm152, %v630, 0
    %633 = vmatprep.subr.mxu0 0.0
    %634 = vmatpush1.msra.mxu0 0.0
    %635 = vmatprep.subr.mxu0 0.0
    %636 = vmatpush1.msra.mxu0 0.0
    %637 = vmatprep.subr.mxu0 0.0
    %638 = vmatpush1.msra.mxu0 0.0
    %639 = vmatprep.subr.mxu0 0.0
    %640 = vmatpush1.msra.mxu0 0.0
    %641 = vmatprep.subr.mxu0 0.0
    %642 = vmatpush1.msra.mxu0 0.0
    %643 = vmatprep.subr.mxu0 0.0
    %644 = vmatpush1.msra.mxu0 0.0
    %645 = vmatprep.subr.mxu0 0.0
    %646 = vmatpush1.msra.mxu0 0.0
    %647 = vmatprep.subr.mxu0 0.0
    %648 = vmatpush1.msra.mxu0 0.0
    %649 = vmatprep.subr.mxu0 0.0
    %650 = vmatpush1.msra.mxu0 0.0
    %651 = vmatprep.subr.mxu0 0.0
    %652 = vmatpush1.msra.mxu0 0.0
    %653 = vmatprep.subr.mxu0 0.0
    %654 = vmatpush1.msra.mxu0 0.0
    %655 = vmatprep.subr.mxu0 0.0
    %656 = vmatpush1.msra.mxu0 0.0
    %657 = vmatprep.subr.mxu0 0.0
    %658 = vmatpush1.msra.mxu0 %v132
    %659 = vmatprep.subr.mxu0 0.0
    %660 = vmatpush1.msra.mxu0 %v131
    %661 = vmatprep.subr.mxu0 0.0
    %662 = vmatpush1.msra.mxu0 %v130
    %663 = vmatprep.subr.mxu0 0.0
    %664 = vmatpush1.msra.mxu0 %v129
    %665 = vmatprep.subr.mxu0 0.0
    %666 = vmatpush2.msra.mxu0 0.0
    %667 = vmatprep.subr.mxu0 0.0
    %668 = vmatpush2.msra.mxu0 0.0
    %669 = vmatprep.subr.mxu0 0.0
    %670 = vmatpush2.msra.mxu0 0.0
    %671 = vmatprep.subr.mxu0 0.0
    %672 = vmatpush2.msra.mxu0 0.0
    %673 = vmatprep.subr.mxu0 0.0
    %674 = vmatpush2.msra.mxu0 0.0
    %675 = vmatprep.subr.mxu0 0.0
    %676 = vmatpush2.msra.mxu0 0.0
    %677 = vmatprep.subr.mxu0 0.0
    %678 = vmatpush2.msra.mxu0 0.0
    %679 = vmatprep.subr.mxu0 0.0
    %680 = vmatpush2.msra.mxu0 0.0
    %681 = vmatprep.subr.mxu0 0.0
    %682 = vmatpush2.msra.mxu0 0.0
    %683 = vmatprep.subr.mxu0 0.0
    %684 = vmatpush2.msra.mxu0 0.0
    %685 = vmatprep.subr.mxu0 0.0
    %686 = vmatpush2.msra.mxu0 0.0
    %687 = vmatprep.subr.mxu0 0.0
    %688 = vmatpush2.msra.mxu0 0.0
    %689 = vmatprep.subr.mxu0 0.0
    %690 = vmatpush2.msra.mxu0 0.0
    %691 = vmatprep.subr.mxu0 0.0
    %692 = vmatpush2.msra.mxu0 0.0
    %693 = vmatprep.subr.mxu0 0.0
    %694 = vmatpush2.msra.mxu0 0.0
    %695 = vmatprep.subr.mxu0 0.0
    %696 = vmatpush2.msra.mxu0 0.0
    %697 = vmatprep.mubr.f32.mxu0 0.0
    %698 = vmatmul.mubr.f32.gmra.mxu0 %v631
    %v699 = vpop.f32.mrf.mxu0
    %v700 = vadd.f32 0.0, %v699
    %v701 = vpop.f32.mrf.mxu0
    %702 = vdwg.mxu0
    %v704 = vrot.slane %v700, 2
    %v706 = vadd.f32 %v121, %v704
    %v707 = vtanh.pop %v706
    %v709 = vrot.slane %v628, 2
    %710 = vrot.lane.b32.xlu0 %v709, 32
    %v711 = vpop.permute.xlu0 %710
    %v713 = vsel %vm152, %v707, %v711
    %v715 = vrot.slane %v713, 6
    %v716 = vsel %vm235, %v715, 0
    %718 = vmatprep.subr.mxu0 0.0
    %719 = vmatpush1.msra.mxu0 0.0
    %720 = vmatprep.subr.mxu0 0.0
    %721 = vmatpush1.msra.mxu0 0.0
    %722 = vmatprep.subr.mxu0 0.0
    %723 = vmatpush1.msra.mxu0 0.0
    %724 = vmatprep.subr.mxu0 0.0
    %725 = vmatpush1.msra.mxu0 0.0
    %726 = vmatprep.subr.mxu0 0.0
    %727 = vmatpush1.msra.mxu0 0.0
    %728 = vmatprep.subr.mxu0 0.0
    %729 = vmatpush1.msra.mxu0 0.0
    %730 = vmatprep.subr.mxu0 0.0
    %731 = vmatpush1.msra.mxu0 0.0
    %732 = vmatprep.subr.mxu0 0.0
    %733 = vmatpush1.msra.mxu0 0.0
    %734 = vmatprep.subr.mxu0 0.0
    %735 = vmatpush1.msra.mxu0 %v140
    %736 = vmatprep.subr.mxu0 0.0
    %737 = vmatpush1.msra.mxu0 %v139
    %738 = vmatprep.subr.mxu0 0.0
    %739 = vmatpush1.msra.mxu0 %v138
    %740 = vmatprep.subr.mxu0 0.0
    %741 = vmatpush1.msra.mxu0 %v137
    %742 = vmatprep.subr.mxu0 0.0
    %743 = vmatpush1.msra.mxu0 %v136
    %744 = vmatprep.subr.mxu0 0.0
    %745 = vmatpush1.msra.mxu0 %v135
    %746 = vmatprep.subr.mxu0 0.0
    %747 = vmatpush1.msra.mxu0 %v134
    %748 = vmatprep.subr.mxu0 0.0
    %749 = vmatpush1.msra.mxu0 %v133
    %750 = vmatprep.subr.mxu0 0.0
    %751 = vmatpush2.msra.mxu0 0.0
    %752 = vmatprep.subr.mxu0 0.0
    %753 = vmatpush2.msra.mxu0 0.0
    %754 = vmatprep.subr.mxu0 0.0
    %755 = vmatpush2.msra.mxu0 0.0
    %756 = vmatprep.subr.mxu0 0.0
    %757 = vmatpush2.msra.mxu0 0.0
    %758 = vmatprep.subr.mxu0 0.0
    %759 = vmatpush2.msra.mxu0 0.0
    %760 = vmatprep.subr.mxu0 0.0
    %761 = vmatpush2.msra.mxu0 0.0
    %762 = vmatprep.subr.mxu0 0.0
    %763 = vmatpush2.msra.mxu0 0.0
    %764 = vmatprep.subr.mxu0 0.0
    %765 = vmatpush2.msra.mxu0 0.0
    %766 = vmatprep.subr.mxu0 0.0
    %767 = vmatpush2.msra.mxu0 0.0
    %768 = vmatprep.subr.mxu0 0.0
    %769 = vmatpush2.msra.mxu0 0.0
    %770 = vmatprep.subr.mxu0 0.0
    %771 = vmatpush2.msra.mxu0 0.0
    %772 = vmatprep.subr.mxu0 0.0
    %773 = vmatpush2.msra.mxu0 0.0
    %774 = vmatprep.subr.mxu0 0.0
    %775 = vmatpush2.msra.mxu0 0.0
    %776 = vmatprep.subr.mxu0 0.0
    %777 = vmatpush2.msra.mxu0 0.0
    %778 = vmatprep.subr.mxu0 0.0
    %779 = vmatpush2.msra.mxu0 0.0
    %780 = vmatprep.subr.mxu0 0.0
    %781 = vmatpush2.msra.mxu0 0.0
    %782 = vmatprep.mubr.f32.mxu0 0.0
    %783 = vmatmul.mubr.f32.gmra.mxu0 %v716
    %v784 = vpop.f32.mrf.mxu0
    %v785 = vadd.f32 %v233, %v784
    %v786 = vpop.f32.mrf.mxu0
    %787 = vdwg.mxu0
    %v788 = vtanh.pop %v785
    %v790 = vrot.slane %v707, 6
    %v791 = vsel %vm152, %v790, 0
    %793 = vmatprep.subr.mxu0 0.0
    %794 = vmatpush1.msra.mxu0 0.0
    %795 = vmatprep.subr.mxu0 0.0
    %796 = vmatpush1.msra.mxu0 0.0
    %797 = vmatprep.subr.mxu0 0.0
    %798 = vmatpush1.msra.mxu0 0.0
    %799 = vmatprep.subr.mxu0 0.0
    %800 = vmatpush1.msra.mxu0 0.0
    %801 = vmatprep.subr.mxu0 0.0
    %802 = vmatpush1.msra.mxu0 0.0
    %803 = vmatprep.subr.mxu0 0.0
    %804 = vmatpush1.msra.mxu0 0.0
    %805 = vmatprep.subr.mxu0 0.0
    %806 = vmatpush1.msra.mxu0 0.0
    %807 = vmatprep.subr.mxu0 0.0
    %808 = vmatpush1.msra.mxu0 0.0
    %809 = vmatprep.subr.mxu0 0.0
    %810 = vmatpush1.msra.mxu0 0.0
    %811 = vmatprep.subr.mxu0 0.0
    %812 = vmatpush1.msra.mxu0 0.0
    %813 = vmatprep.subr.mxu0 0.0
    %814 = vmatpush1.msra.mxu0 0.0
    %815 = vmatprep.subr.mxu0 0.0
    %816 = vmatpush1.msra.mxu0 0.0
    %817 = vmatprep.subr.mxu0 0.0
    %818 = vmatpush1.msra.mxu0 %v132
    %819 = vmatprep.subr.mxu0 0.0
    %820 = vmatpush1.msra.mxu0 %v131
    %821 = vmatprep.subr.mxu0 0.0
    %822 = vmatpush1.msra.mxu0 %v130
    %823 = vmatprep.subr.mxu0 0.0
    %824 = vmatpush1.msra.mxu0 %v129
    %825 = vmatprep.subr.mxu0 0.0
    %826 = vmatpush2.msra.mxu0 0.0
    %827 = vmatprep.subr.mxu0 0.0
    %828 = vmatpush2.msra.mxu0 0.0
    %829 = vmatprep.subr.mxu0 0.0
    %830 = vmatpush2.msra.mxu0 0.0
    %831 = vmatprep.subr.mxu0 0.0
    %832 = vmatpush2.msra.mxu0 0.0
    %833 = vmatprep.subr.mxu0 0.0
    %834 = vmatpush2.msra.mxu0 0.0
    %835 = vmatprep.subr.mxu0 0.0
    %836 = vmatpush2.msra.mxu0 0.0
    %837 = vmatprep.subr.mxu0 0.0
    %838 = vmatpush2.msra.mxu0 0.0
    %839 = vmatprep.subr.mxu0 0.0
    %840 = vmatpush2.msra.mxu0 0.0
    %841 = vmatprep.subr.mxu0 0.0
    %842 = vmatpush2.msra.mxu0 0.0
    %843 = vmatprep.subr.mxu0 0.0
    %844 = vmatpush2.msra.mxu0 0.0
    %845 = vmatprep.subr.mxu0 0.0
    %846 = vmatpush2.msra.mxu0 0.0
    %847 = vmatprep.subr.mxu0 0.0
    %848 = vmatpush2.msra.mxu0 0.0
    %849 = vmatprep.subr.mxu0 0.0
    %850 = vmatpush2.msra.mxu0 0.0
    %851 = vmatprep.subr.mxu0 0.0
    %852 = vmatpush2.msra.mxu0 0.0
    %853 = vmatprep.subr.mxu0 0.0
    %854 = vmatpush2.msra.mxu0 0.0
    %855 = vmatprep.subr.mxu0 0.0
    %856 = vmatpush2.msra.mxu0 0.0
    %857 = vmatprep.mubr.f32.mxu0 0.0
    %858 = vmatmul.mubr.f32.gmra.mxu0 %v791
    %v859 = vpop.f32.mrf.mxu0
    %v860 = vadd.f32 0.0, %v859
    %v861 = vpop.f32.mrf.mxu0
    %862 = vdwg.mxu0
    %v863 = vadd.f32 %v126, %v860
    %v864 = vtanh.pop %v863
    %866 = vrot.lane.b32.xlu0 %v788, 32
    %v867 = vpop.permute.xlu0 %866
    %v869 = vsel %vm152, %v864, %v867
    %v871 = vsel %vm235, %v869, 0
    %873 = vmatprep.subr.mxu0 0.0
    %874 = vmatpush1.msra.mxu0 0.0
    %875 = vmatprep.subr.mxu0 0.0
    %876 = vmatpush1.msra.mxu0 0.0
    %877 = vmatprep.subr.mxu0 0.0
    %878 = vmatpush1.msra.mxu0 0.0
    %879 = vmatprep.subr.mxu0 0.0
    %880 = vmatpush1.msra.mxu0 0.0
    %881 = vmatprep.subr.mxu0 0.0
    %882 = vmatpush1.msra.mxu0 0.0
    %883 = vmatprep.subr.mxu0 0.0
    %884 = vmatpush1.msra.mxu0 0.0
    %885 = vmatprep.subr.mxu0 0.0
    %886 = vmatpush1.msra.mxu0 0.0
    %887 = vmatprep.subr.mxu0 0.0
    %888 = vmatpush1.msra.mxu0 0.0
    %889 = vmatprep.subr.mxu0 0.0
    %890 = vmatpush1.msra.mxu0 %v140
    %891 = vmatprep.subr.mxu0 0.0
    %892 = vmatpush1.msra.mxu0 %v139
    %893 = vmatprep.subr.mxu0 0.0
    %894 = vmatpush1.msra.mxu0 %v138
    %895 = vmatprep.subr.mxu0 0.0
    %896 = vmatpush1.msra.mxu0 %v137
    %897 = vmatprep.subr.mxu0 0.0
    %898 = vmatpush1.msra.mxu0 %v136
    %899 = vmatprep.subr.mxu0 0.0
    %900 = vmatpush1.msra.mxu0 %v135
    %901 = vmatprep.subr.mxu0 0.0
    %902 = vmatpush1.msra.mxu0 %v134
    %903 = vmatprep.subr.mxu0 0.0
    %904 = vmatpush1.msra.mxu0 %v133
    %905 = vmatprep.subr.mxu0 0.0
    %906 = vmatpush2.msra.mxu0 0.0
    %907 = vmatprep.subr.mxu0 0.0
    %908 = vmatpush2.msra.mxu0 0.0
    %909 = vmatprep.subr.mxu0 0.0
    %910 = vmatpush2.msra.mxu0 0.0
    %911 = vmatprep.subr.mxu0 0.0
    %912 = vmatpush2.msra.mxu0 0.0
    %913 = vmatprep.subr.mxu0 0.0
    %914 = vmatpush2.msra.mxu0 0.0
    %915 = vmatprep.subr.mxu0 0.0
    %916 = vmatpush2.msra.mxu0 0.0
    %917 = vmatprep.subr.mxu0 0.0
    %918 = vmatpush2.msra.mxu0 0.0
    %919 = vmatprep.subr.mxu0 0.0
    %920 = vmatpush2.msra.mxu0 0.0
    %921 = vmatprep.subr.mxu0 0.0
    %922 = vmatpush2.msra.mxu0 0.0
    %923 = vmatprep.subr.mxu0 0.0
    %924 = vmatpush2.msra.mxu0 0.0
    %925 = vmatprep.subr.mxu0 0.0
    %926 = vmatpush2.msra.mxu0 0.0
    %927 = vmatprep.subr.mxu0 0.0
    %928 = vmatpush2.msra.mxu0 0.0
    %929 = vmatprep.subr.mxu0 0.0
    %930 = vmatpush2.msra.mxu0 0.0
    %931 = vmatprep.subr.mxu0 0.0
    %932 = vmatpush2.msra.mxu0 0.0
    %933 = vmatprep.subr.mxu0 0.0
    %934 = vmatpush2.msra.mxu0 0.0
    %935 = vmatprep.subr.mxu0 0.0
    %936 = vmatpush2.msra.mxu0 0.0
    %937 = vmatprep.mubr.f32.mxu0 0.0
    %938 = vmatmul.mubr.f32.gmra.mxu0 %v871
    %v939 = vpop.f32.mrf.mxu0
    %v940 = vadd.f32 %v233, %v939
    %v941 = vpop.f32.mrf.mxu0
    %942 = vdwg.mxu0
    %v943 = vtanh.pop %v940
    %v945 = vsel %vm152, %v864, 0
    %947 = vmatprep.subr.mxu0 0.0
    %948 = vmatpush1.msra.mxu0 0.0
    %949 = vmatprep.subr.mxu0 0.0
    %950 = vmatpush1.msra.mxu0 0.0
    %951 = vmatprep.subr.mxu0 0.0
    %952 = vmatpush1.msra.mxu0 0.0
    %953 = vmatprep.subr.mxu0 0.0
    %954 = vmatpush1.msra.mxu0 0.0
    %955 = vmatprep.subr.mxu0 0.0
    %956 = vmatpush1.msra.mxu0 0.0
    %957 = vmatprep.subr.mxu0 0.0
    %958 = vmatpush1.msra.mxu0 0.0
    %959 = vmatprep.subr.mxu0 0.0
    %960 = vmatpush1.msra.mxu0 0.0
    %961 = vmatprep.subr.mxu0 0.0
    %962 = vmatpush1.msra.mxu0 0.0
    %963 = vmatprep.subr.mxu0 0.0
    %964 = vmatpush1.msra.mxu0 0.0
    %965 = vmatprep.subr.mxu0 0.0
    %966 = vmatpush1.msra.mxu0 0.0
    %967 = vmatprep.subr.mxu0 0.0
    %968 = vmatpush1.msra.mxu0 0.0
    %969 = vmatprep.subr.mxu0 0.0
    %970 = vmatpush1.msra.mxu0 0.0
    %971 = vmatprep.subr.mxu0 0.0
    %972 = vmatpush1.msra.mxu0 %v132
    %973 = vmatprep.subr.mxu0 0.0
    %974 = vmatpush1.msra.mxu0 %v131
    %975 = vmatprep.subr.mxu0 0.0
    %976 = vmatpush1.msra.mxu0 %v130
    %977 = vmatprep.subr.mxu0 0.0
    %978 = vmatpush1.msra.mxu0 %v129
    %979 = vmatprep.subr.mxu0 0.0
    %980 = vmatpush2.msra.mxu0 0.0
    %981 = vmatprep.subr.mxu0 0.0
    %982 = vmatpush2.msra.mxu0 0.0
    %983 = vmatprep.subr.mxu0 0.0
    %984 = vmatpush2.msra.mxu0 0.0
    %985 = vmatprep.subr.mxu0 0.0
    %986 = vmatpush2.msra.mxu0 0.0
    %987 = vmatprep.subr.mxu0 0.0
    %988 = vmatpush2.msra.mxu0 0.0
    %989 = vmatprep.subr.mxu0 0.0
    %990 = vmatpush2.msra.mxu0 0.0
    %991 = vmatprep.subr.mxu0 0.0
    %992 = vmatpush2.msra.mxu0 0.0
    %993 = vmatprep.subr.mxu0 0.0
    %994 = vmatpush2.msra.mxu0 0.0
    %995 = vmatprep.subr.mxu0 0.0
    %996 = vmatpush2.msra.mxu0 0.0
    %997 = vmatprep.subr.mxu0 0.0
    %998 = vmatpush2.msra.mxu0 0.0
    %999 = vmatprep.subr.mxu0 0.0
    %1000 = vmatpush2.msra.mxu0 0.0
    %1001 = vmatprep.subr.mxu0 0.0
    %1002 = vmatpush2.msra.mxu0 0.0
    %1003 = vmatprep.subr.mxu0 0.0
    %1004 = vmatpush2.msra.mxu0 0.0
    %1005 = vmatprep.subr.mxu0 0.0
    %1006 = vmatpush2.msra.mxu0 0.0
    %1007 = vmatprep.subr.mxu0 0.0
    %1008 = vmatpush2.msra.mxu0 0.0
    %1009 = vmatprep.subr.mxu0 0.0
    %1010 = vmatpush2.msra.mxu0 0.0
    %1011 = vmatprep.mubr.f32.mxu0 0.0
    %1012 = vmatmul.mubr.f32.gmra.mxu0 %v945
    %v1013 = vpop.f32.mrf.mxu0
    %v1014 = vadd.f32 0.0, %v1013
    %v1015 = vpop.f32.mrf.mxu0
    %1016 = vdwg.mxu0
    %v1018 = vrot.slane %v1014, 6
    %v1020 = vadd.f32 %v126, %v1018
    %v1021 = vtanh.pop %v1020
    %v1023 = vrot.slane %v943, 6
    %1024 = vrot.lane.b32.xlu0 %v1023, 32
    %v1025 = vpop.permute.xlu0 %1024
    %v1027 = vsel %vm152, %v1021, %v1025
    %v1029 = vrot.slane %v1027, 2
    %v1030 = vsel %vm235, %v1029, 0
    %1032 = vmatprep.subr.mxu0 0.0
    %1033 = vmatpush1.msra.mxu0 0.0
    %1034 = vmatprep.subr.mxu0 0.0
    %1035 = vmatpush1.msra.mxu0 0.0
    %1036 = vmatprep.subr.mxu0 0.0
    %1037 = vmatpush1.msra.mxu0 0.0
    %1038 = vmatprep.subr.mxu0 0.0
    %1039 = vmatpush1.msra.mxu0 0.0
    %1040 = vmatprep.subr.mxu0 0.0
    %1041 = vmatpush1.msra.mxu0 0.0
    %1042 = vmatprep.subr.mxu0 0.0
    %1043 = vmatpush1.msra.mxu0 0.0
    %1044 = vmatprep.subr.mxu0 0.0
    %1045 = vmatpush1.msra.mxu0 0.0
    %1046 = vmatprep.subr.mxu0 0.0
    %1047 = vmatpush1.msra.mxu0 0.0
    %1048 = vmatprep.subr.mxu0 0.0
    %1049 = vmatpush1.msra.mxu0 %v140
    %1050 = vmatprep.subr.mxu0 0.0
    %1051 = vmatpush1.msra.mxu0 %v139
    %1052 = vmatprep.subr.mxu0 0.0
    %1053 = vmatpush1.msra.mxu0 %v138
    %1054 = vmatprep.subr.mxu0 0.0
    %1055 = vmatpush1.msra.mxu0 %v137
    %1056 = vmatprep.subr.mxu0 0.0
    %1057 = vmatpush1.msra.mxu0 %v136
    %1058 = vmatprep.subr.mxu0 0.0
    %1059 = vmatpush1.msra.mxu0 %v135
    %1060 = vmatprep.subr.mxu0 0.0
    %1061 = vmatpush1.msra.mxu0 %v134
    %1062 = vmatprep.subr.mxu0 0.0
    %1063 = vmatpush1.msra.mxu0 %v133
    %1064 = vmatprep.subr.mxu0 0.0
    %1065 = vmatpush2.msra.mxu0 0.0
    %1066 = vmatprep.subr.mxu0 0.0
    %1067 = vmatpush2.msra.mxu0 0.0
    %1068 = vmatprep.subr.mxu0 0.0
    %1069 = vmatpush2.msra.mxu0 0.0
    %1070 = vmatprep.subr.mxu0 0.0
    %1071 = vmatpush2.msra.mxu0 0.0
    %1072 = vmatprep.subr.mxu0 0.0
    %1073 = vmatpush2.msra.mxu0 0.0
    %1074 = vmatprep.subr.mxu0 0.0
    %1075 = vmatpush2.msra.mxu0 0.0
    %1076 = vmatprep.subr.mxu0 0.0
    %1077 = vmatpush2.msra.mxu0 0.0
    %1078 = vmatprep.subr.mxu0 0.0
    %1079 = vmatpush2.msra.mxu0 0.0
    %1080 = vmatprep.subr.mxu0 0.0
    %1081 = vmatpush2.msra.mxu0 0.0
    %1082 = vmatprep.subr.mxu0 0.0
    %1083 = vmatpush2.msra.mxu0 0.0
    %1084 = vmatprep.subr.mxu0 0.0
    %1085 = vmatpush2.msra.mxu0 0.0
    %1086 = vmatprep.subr.mxu0 0.0
    %1087 = vmatpush2.msra.mxu0 0.0
    %1088 = vmatprep.subr.mxu0 0.0
    %1089 = vmatpush2.msra.mxu0 0.0
    %1090 = vmatprep.subr.mxu0 0.0
    %1091 = vmatpush2.msra.mxu0 0.0
    %1092 = vmatprep.subr.mxu0 0.0
    %1093 = vmatpush2.msra.mxu0 0.0
    %1094 = vmatprep.subr.mxu0 0.0
    %1095 = vmatpush2.msra.mxu0 0.0
    %1096 = vmatprep.mubr.f32.mxu0 0.0
    %1097 = vmatmul.mubr.f32.gmra.mxu0 %v1030
    %v1098 = vpop.f32.mrf.mxu0
    %v1099 = vadd.f32 %v233, %v1098
    %v1100 = vpop.f32.mrf.mxu0
    %1101 = vdwg.mxu0
    %v1102 = vtanh.pop %v1099
    %v1104 = vrot.slane %v1021, 2
    %v1105 = vsel %vm152, %v1104, 0
    %1107 = vmatprep.subr.mxu0 0.0
    %1108 = vmatpush1.msra.mxu0 0.0
    %1109 = vmatprep.subr.mxu0 0.0
    %1110 = vmatpush1.msra.mxu0 0.0
    %1111 = vmatprep.subr.mxu0 0.0
    %1112 = vmatpush1.msra.mxu0 0.0
    %1113 = vmatprep.subr.mxu0 0.0
    %1114 = vmatpush1.msra.mxu0 0.0
    %1115 = vmatprep.subr.mxu0 0.0
    %1116 = vmatpush1.msra.mxu0 0.0
    %1117 = vmatprep.subr.mxu0 0.0
    %1118 = vmatpush1.msra.mxu0 0.0
    %1119 = vmatprep.subr.mxu0 0.0
    %1120 = vmatpush1.msra.mxu0 0.0
    %1121 = vmatprep.subr.mxu0 0.0
    %1122 = vmatpush1.msra.mxu0 0.0
    %1123 = vmatprep.subr.mxu0 0.0
    %1124 = vmatpush1.msra.mxu0 0.0
    %1125 = vmatprep.subr.mxu0 0.0
    %1126 = vmatpush1.msra.mxu0 0.0
    %1127 = vmatprep.subr.mxu0 0.0
    %1128 = vmatpush1.msra.mxu0 0.0
    %1129 = vmatprep.subr.mxu0 0.0
    %1130 = vmatpush1.msra.mxu0 0.0
    %1131 = vmatprep.subr.mxu0 0.0
    %1132 = vmatpush1.msra.mxu0 %v132
    %1133 = vmatprep.subr.mxu0 0.0
    %1134 = vmatpush1.msra.mxu0 %v131
    %1135 = vmatprep.subr.mxu0 0.0
    %1136 = vmatpush1.msra.mxu0 %v130
    %1137 = vmatprep.subr.mxu0 0.0
    %1138 = vmatpush1.msra.mxu0 %v129
    %1139 = vmatprep.subr.mxu0 0.0
    %1140 = vmatpush2.msra.mxu0 0.0
    %1141 = vmatprep.subr.mxu0 0.0
    %1142 = vmatpush2.msra.mxu0 0.0
    %1143 = vmatprep.subr.mxu0 0.0
    %1144 = vmatpush2.msra.mxu0 0.0
    %1145 = vmatprep.subr.mxu0 0.0
    %1146 = vmatpush2.msra.mxu0 0.0
    %1147 = vmatprep.subr.mxu0 0.0
    %1148 = vmatpush2.msra.mxu0 0.0
    %1149 = vmatprep.subr.mxu0 0.0
    %1150 = vmatpush2.msra.mxu0 0.0
    %1151 = vmatprep.subr.mxu0 0.0
    %1152 = vmatpush2.msra.mxu0 0.0
    %1153 = vmatprep.subr.mxu0 0.0
    %1154 = vmatpush2.msra.mxu0 0.0
    %1155 = vmatprep.subr.mxu0 0.0
    %1156 = vmatpush2.msra.mxu0 0.0
    %1157 = vmatprep.subr.mxu0 0.0
    %1158 = vmatpush2.msra.mxu0 0.0
    %1159 = vmatprep.subr.mxu0 0.0
    %1160 = vmatpush2.msra.mxu0 0.0
    %1161 = vmatprep.subr.mxu0 0.0
    %1162 = vmatpush2.msra.mxu0 0.0
    %1163 = vmatprep.subr.mxu0 0.0
    %1164 = vmatpush2.msra.mxu0 0.0
    %1165 = vmatprep.subr.mxu0 0.0
    %1166 = vmatpush2.msra.mxu0 0.0
    %1167 = vmatprep.subr.mxu0 0.0
    %1168 = vmatpush2.msra.mxu0 0.0
    %1169 = vmatprep.subr.mxu0 0.0
    %1170 = vmatpush2.msra.mxu0 0.0
    %1171 = vmatprep.mubr.f32.mxu0 0.0
    %1172 = vmatmul.mubr.f32.gmra.mxu0 %v1105
    %v1173 = vpop.f32.mrf.mxu0
    %v1174 = vadd.f32 0.0, %v1173
    %v1175 = vpop.f32.mrf.mxu0
    %1176 = vdwg.mxu0
    %v1178 = vrot.slane %v1174, 4
    %v1180 = vadd.f32 %v126, %v1178
    %v1181 = vtanh.pop %v1180
    %v1183 = vrot.slane %v1102, 4
    %1184 = vrot.lane.b32.xlu0 %v1183, 32
    %v1185 = vpop.permute.xlu0 %1184
    %v1187 = vsel %vm152, %v1181, %v1185
    %v1189 = vrot.slane %v1187, 4
    %v1190 = vsel %vm235, %v1189, 0
    %1192 = vmatprep.subr.mxu0 0.0
    %1193 = vmatpush1.msra.mxu0 0.0
    %1194 = vmatprep.subr.mxu0 0.0
    %1195 = vmatpush1.msra.mxu0 0.0
    %1196 = vmatprep.subr.mxu0 0.0
    %1197 = vmatpush1.msra.mxu0 0.0
    %1198 = vmatprep.subr.mxu0 0.0
    %1199 = vmatpush1.msra.mxu0 0.0
    %1200 = vmatprep.subr.mxu0 0.0
    %1201 = vmatpush1.msra.mxu0 0.0
    %1202 = vmatprep.subr.mxu0 0.0
    %1203 = vmatpush1.msra.mxu0 0.0
    %1204 = vmatprep.subr.mxu0 0.0
    %1205 = vmatpush1.msra.mxu0 0.0
    %1206 = vmatprep.subr.mxu0 0.0
    %1207 = vmatpush1.msra.mxu0 0.0
    %1208 = vmatprep.subr.mxu0 0.0
    %1209 = vmatpush1.msra.mxu0 %v140
    %1210 = vmatprep.subr.mxu0 0.0
    %1211 = vmatpush1.msra.mxu0 %v139
    %1212 = vmatprep.subr.mxu0 0.0
    %1213 = vmatpush1.msra.mxu0 %v138
    %1214 = vmatprep.subr.mxu0 0.0
    %1215 = vmatpush1.msra.mxu0 %v137
    %1216 = vmatprep.subr.mxu0 0.0
    %1217 = vmatpush1.msra.mxu0 %v136
    %1218 = vmatprep.subr.mxu0 0.0
    %1219 = vmatpush1.msra.mxu0 %v135
    %1220 = vmatprep.subr.mxu0 0.0
    %1221 = vmatpush1.msra.mxu0 %v134
    %1222 = vmatprep.subr.mxu0 0.0
    %1223 = vmatpush1.msra.mxu0 %v133
    %1224 = vmatprep.subr.mxu0 0.0
    %1225 = vmatpush2.msra.mxu0 0.0
    %1226 = vmatprep.subr.mxu0 0.0
    %1227 = vmatpush2.msra.mxu0 0.0
    %1228 = vmatprep.subr.mxu0 0.0
    %1229 = vmatpush2.msra.mxu0 0.0
    %1230 = vmatprep.subr.mxu0 0.0
    %1231 = vmatpush2.msra.mxu0 0.0
    %1232 = vmatprep.subr.mxu0 0.0
    %1233 = vmatpush2.msra.mxu0 0.0
    %1234 = vmatprep.subr.mxu0 0.0
    %1235 = vmatpush2.msra.mxu0 0.0
    %1236 = vmatprep.subr.mxu0 0.0
    %1237 = vmatpush2.msra.mxu0 0.0
    %1238 = vmatprep.subr.mxu0 0.0
    %1239 = vmatpush2.msra.mxu0 0.0
    %1240 = vmatprep.subr.mxu0 0.0
    %1241 = vmatpush2.msra.mxu0 0.0
    %1242 = vmatprep.subr.mxu0 0.0
    %1243 = vmatpush2.msra.mxu0 0.0
    %1244 = vmatprep.subr.mxu0 0.0
    %1245 = vmatpush2.msra.mxu0 0.0
    %1246 = vmatprep.subr.mxu0 0.0
    %1247 = vmatpush2.msra.mxu0 0.0
    %1248 = vmatprep.subr.mxu0 0.0
    %1249 = vmatpush2.msra.mxu0 0.0
    %1250 = vmatprep.subr.mxu0 0.0
    %1251 = vmatpush2.msra.mxu0 0.0
    %1252 = vmatprep.subr.mxu0 0.0
    %1253 = vmatpush2.msra.mxu0 0.0
    %1254 = vmatprep.subr.mxu0 0.0
    %1255 = vmatpush2.msra.mxu0 0.0
    %1256 = vmatprep.mubr.f32.mxu0 0.0
    %1257 = vmatmul.mubr.f32.gmra.mxu0 %v1190
    %v1258 = vpop.f32.mrf.mxu0
    %v1259 = vadd.f32 %v233, %v1258
    %v1260 = vpop.f32.mrf.mxu0
    %1261 = vdwg.mxu0
    %v1262 = vtanh.pop %v1259
    %v1264 = vrot.slane %v1181, 4
    %v1265 = vsel %vm152, %v1264, 0
    %1267 = vmatprep.subr.mxu0 0.0
    %1268 = vmatpush1.msra.mxu0 0.0
    %1269 = vmatprep.subr.mxu0 0.0
    %1270 = vmatpush1.msra.mxu0 0.0
    %1271 = vmatprep.subr.mxu0 0.0
    %1272 = vmatpush1.msra.mxu0 0.0
    %1273 = vmatprep.subr.mxu0 0.0
    %1274 = vmatpush1.msra.mxu0 0.0
    %1275 = vmatprep.subr.mxu0 0.0
    %1276 = vmatpush1.msra.mxu0 0.0
    %1277 = vmatprep.subr.mxu0 0.0
    %1278 = vmatpush1.msra.mxu0 0.0
    %1279 = vmatprep.subr.mxu0 0.0
    %1280 = vmatpush1.msra.mxu0 0.0
    %1281 = vmatprep.subr.mxu0 0.0
    %1282 = vmatpush1.msra.mxu0 0.0
    %1283 = vmatprep.subr.mxu0 0.0
    %1284 = vmatpush1.msra.mxu0 0.0
    %1285 = vmatprep.subr.mxu0 0.0
    %1286 = vmatpush1.msra.mxu0 0.0
    %1287 = vmatprep.subr.mxu0 0.0
    %1288 = vmatpush1.msra.mxu0 0.0
    %1289 = vmatprep.subr.mxu0 0.0
    %1290 = vmatpush1.msra.mxu0 0.0
    %1291 = vmatprep.subr.mxu0 0.0
    %1292 = vmatpush1.msra.mxu0 %v132
    %1293 = vmatprep.subr.mxu0 0.0
    %1294 = vmatpush1.msra.mxu0 %v131
    %1295 = vmatprep.subr.mxu0 0.0
    %1296 = vmatpush1.msra.mxu0 %v130
    %1297 = vmatprep.subr.mxu0 0.0
    %1298 = vmatpush1.msra.mxu0 %v129
    %1299 = vmatprep.subr.mxu0 0.0
    %1300 = vmatpush2.msra.mxu0 0.0
    %1301 = vmatprep.subr.mxu0 0.0
    %1302 = vmatpush2.msra.mxu0 0.0
    %1303 = vmatprep.subr.mxu0 0.0
    %1304 = vmatpush2.msra.mxu0 0.0
    %1305 = vmatprep.subr.mxu0 0.0
    %1306 = vmatpush2.msra.mxu0 0.0
    %1307 = vmatprep.subr.mxu0 0.0
    %1308 = vmatpush2.msra.mxu0 0.0
    %1309 = vmatprep.subr.mxu0 0.0
    %1310 = vmatpush2.msra.mxu0 0.0
    %1311 = vmatprep.subr.mxu0 0.0
    %1312 = vmatpush2.msra.mxu0 0.0
    %1313 = vmatprep.subr.mxu0 0.0
    %1314 = vmatpush2.msra.mxu0 0.0
    %1315 = vmatprep.subr.mxu0 0.0
    %1316 = vmatpush2.msra.mxu0 0.0
    %1317 = vmatprep.subr.mxu0 0.0
    %1318 = vmatpush2.msra.mxu0 0.0
    %1319 = vmatprep.subr.mxu0 0.0
    %1320 = vmatpush2.msra.mxu0 0.0
    %1321 = vmatprep.subr.mxu0 0.0
    %1322 = vmatpush2.msra.mxu0 0.0
    %1323 = vmatprep.subr.mxu0 0.0
    %1324 = vmatpush2.msra.mxu0 0.0
    %1325 = vmatprep.subr.mxu0 0.0
    %1326 = vmatpush2.msra.mxu0 0.0
    %1327 = vmatprep.subr.mxu0 0.0
    %1328 = vmatpush2.msra.mxu0 0.0
    %1329 = vmatprep.subr.mxu0 0.0
    %1330 = vmatpush2.msra.mxu0 0.0
    %1331 = vmatprep.mubr.f32.mxu0 0.0
    %1332 = vmatmul.mubr.f32.gmra.mxu0 %v1265
    %v1333 = vpop.f32.mrf.mxu0
    %v1334 = vadd.f32 0.0, %v1333
    %v1335 = vpop.f32.mrf.mxu0
    %1336 = vdwg.mxu0
    %v1338 = vrot.slane %v1334, 2
    %v1340 = vadd.f32 %v126, %v1338
    %v1341 = vtanh.pop %v1340
    %v1343 = vrot.slane %v1262, 2
    %1344 = vrot.lane.b32.xlu0 %v1343, 32
    %v1345 = vpop.permute.xlu0 %1344
    %v1347 = vsel %vm152, %v1341, %v1345
    %v1349 = vrot.slane %v1347, 6
    %v1350 = vsel %vm235, %v1349, 0
    %1352 = vmatprep.subr.mxu0 0.0
    %1353 = vmatpush1.msra.mxu0 0.0
    %1354 = vmatprep.subr.mxu0 0.0
    %1355 = vmatpush1.msra.mxu0 0.0
    %1356 = vmatprep.subr.mxu0 0.0
    %1357 = vmatpush1.msra.mxu0 0.0
    %1358 = vmatprep.subr.mxu0 0.0
    %1359 = vmatpush1.msra.mxu0 0.0
    %1360 = vmatprep.subr.mxu0 0.0
    %1361 = vmatpush1.msra.mxu0 0.0
    %1362 = vmatprep.subr.mxu0 0.0
    %1363 = vmatpush1.msra.mxu0 0.0
    %1364 = vmatprep.subr.mxu0 0.0
    %1365 = vmatpush1.msra.mxu0 0.0
    %1366 = vmatprep.subr.mxu0 0.0
    %1367 = vmatpush1.msra.mxu0 0.0
    %1368 = vmatprep.subr.mxu0 0.0
    %1369 = vmatpush1.msra.mxu0 %v140
    %1370 = vmatprep.subr.mxu0 0.0
    %1371 = vmatpush1.msra.mxu0 %v139
    %1372 = vmatprep.subr.mxu0 0.0
    %1373 = vmatpush1.msra.mxu0 %v138
    %1374 = vmatprep.subr.mxu0 0.0
    %1375 = vmatpush1.msra.mxu0 %v137
    %1376 = vmatprep.subr.mxu0 0.0
    %1377 = vmatpush1.msra.mxu0 %v136
    %1378 = vmatprep.subr.mxu0 0.0
    %1379 = vmatpush1.msra.mxu0 %v135
    %1380 = vmatprep.subr.mxu0 0.0
    %1381 = vmatpush1.msra.mxu0 %v134
    %1382 = vmatprep.subr.mxu0 0.0
    %1383 = vmatpush1.msra.mxu0 %v133
    %1384 = vmatprep.subr.mxu0 0.0
    %1385 = vmatpush2.msra.mxu0 0.0
    %1386 = vmatprep.subr.mxu0 0.0
    %1387 = vmatpush2.msra.mxu0 0.0
    %1388 = vmatprep.subr.mxu0 0.0
    %1389 = vmatpush2.msra.mxu0 0.0
    %1390 = vmatprep.subr.mxu0 0.0
    %1391 = vmatpush2.msra.mxu0 0.0
    %1392 = vmatprep.subr.mxu0 0.0
    %1393 = vmatpush2.msra.mxu0 0.0
    %1394 = vmatprep.subr.mxu0 0.0
    %1395 = vmatpush2.msra.mxu0 0.0
    %1396 = vmatprep.subr.mxu0 0.0
    %1397 = vmatpush2.msra.mxu0 0.0
    %1398 = vmatprep.subr.mxu0 0.0
    %1399 = vmatpush2.msra.mxu0 0.0
    %1400 = vmatprep.subr.mxu0 0.0
    %1401 = vmatpush2.msra.mxu0 0.0
    %1402 = vmatprep.subr.mxu0 0.0
    %1403 = vmatpush2.msra.mxu0 0.0
    %1404 = vmatprep.subr.mxu0 0.0
    %1405 = vmatpush2.msra.mxu0 0.0
    %1406 = vmatprep.subr.mxu0 0.0
    %1407 = vmatpush2.msra.mxu0 0.0
    %1408 = vmatprep.subr.mxu0 0.0
    %1409 = vmatpush2.msra.mxu0 0.0
    %1410 = vmatprep.subr.mxu0 0.0
    %1411 = vmatpush2.msra.mxu0 0.0
    %1412 = vmatprep.subr.mxu0 0.0
    %1413 = vmatpush2.msra.mxu0 0.0
    %1414 = vmatprep.subr.mxu0 0.0
    %1415 = vmatpush2.msra.mxu0 0.0
    %1416 = vmatprep.mubr.f32.mxu0 0.0
    %1417 = vmatmul.mubr.f32.gmra.mxu0 %v1350
    %v1418 = vpop.f32.mrf.mxu0
    %v1419 = vadd.f32 %v233, %v1418
    %v1420 = vpop.f32.mrf.mxu0
    %1421 = vdwg.mxu0
    %v1422 = vtanh.pop %v1419
    %v1424 = vlaneseq
    %v1425 = vshrl.u32 %v1424, 7
    %v1426 = vsub.s32 0, %v1425
    %v1427 = vrot.slane %v146, %v1426
    %v1430 = vsel %vm152, %v1422, 0
    %1432 = vmatprep.subr.mxu0 0.0
    %1433 = vmatpush1.msra.mxu0 0.0
    %1434 = vmatprep.subr.mxu0 0.0
    %1435 = vmatpush1.msra.mxu0 0.0
    %1436 = vmatprep.subr.mxu0 0.0
    %1437 = vmatpush1.msra.mxu0 0.0
    %1438 = vmatprep.subr.mxu0 0.0
    %1439 = vmatpush1.msra.mxu0 0.0
    %1440 = vmatprep.subr.mxu0 0.0
    %1441 = vmatpush1.msra.mxu0 0.0
    %1442 = vmatprep.subr.mxu0 0.0
    %1443 = vmatpush1.msra.mxu0 0.0
    %1444 = vmatprep.subr.mxu0 0.0
    %1445 = vmatpush1.msra.mxu0 0.0
    %1446 = vmatprep.subr.mxu0 0.0
    %1447 = vmatpush1.msra.mxu0 0.0
    %1448 = vmatprep.subr.mxu0 0.0
    %1449 = vmatpush1.msra.mxu0 0.0
    %1450 = vmatprep.subr.mxu0 0.0
    %1451 = vmatpush1.msra.mxu0 0.0
    %1452 = vmatprep.subr.mxu0 0.0
    %1453 = vmatpush1.msra.mxu0 0.0
    %1454 = vmatprep.subr.mxu0 0.0
    %1455 = vmatpush1.msra.mxu0 0.0
    %1456 = vmatprep.subr.mxu0 0.0
    %1457 = vmatpush1.msra.mxu0 %v145
    %1458 = vmatprep.subr.mxu0 0.0
    %1459 = vmatpush1.msra.mxu0 %v144
    %1460 = vmatprep.subr.mxu0 0.0
    %1461 = vmatpush1.msra.mxu0 %v143
    %1462 = vmatprep.subr.mxu0 0.0
    %1463 = vmatpush1.msra.mxu0 %v142
    %1464 = vmatprep.subr.mxu0 0.0
    %1465 = vmatpush2.msra.mxu0 0.0
    %1466 = vmatprep.subr.mxu0 0.0
    %1467 = vmatpush2.msra.mxu0 0.0
    %1468 = vmatprep.subr.mxu0 0.0
    %1469 = vmatpush2.msra.mxu0 0.0
    %1470 = vmatprep.subr.mxu0 0.0
    %1471 = vmatpush2.msra.mxu0 0.0
    %1472 = vmatprep.subr.mxu0 0.0
    %1473 = vmatpush2.msra.mxu0 0.0
    %1474 = vmatprep.subr.mxu0 0.0
    %1475 = vmatpush2.msra.mxu0 0.0
    %1476 = vmatprep.subr.mxu0 0.0
    %1477 = vmatpush2.msra.mxu0 0.0
    %1478 = vmatprep.subr.mxu0 0.0
    %1479 = vmatpush2.msra.mxu0 0.0
    %1480 = vmatprep.subr.mxu0 0.0
    %1481 = vmatpush2.msra.mxu0 0.0
    %1482 = vmatprep.subr.mxu0 0.0
    %1483 = vmatpush2.msra.mxu0 0.0
    %1484 = vmatprep.subr.mxu0 0.0
    %1485 = vmatpush2.msra.mxu0 0.0
    %1486 = vmatprep.subr.mxu0 0.0
    %1487 = vmatpush2.msra.mxu0 0.0
    %1488 = vmatprep.subr.mxu0 0.0
    %1489 = vmatpush2.msra.mxu0 0.0
    %1490 = vmatprep.subr.mxu0 0.0
    %1491 = vmatpush2.msra.mxu0 0.0
    %1492 = vmatprep.subr.mxu0 0.0
    %1493 = vmatpush2.msra.mxu0 0.0
    %1494 = vmatprep.subr.mxu0 0.0
    %1495 = vmatpush2.msra.mxu0 0.0
    %1496 = vmatprep.mubr.f32.mxu0 0.0
    %1497 = vmatmul.mubr.f32.gmra.mxu0 %v1430
    %v1498 = vpop.f32.mrf.mxu0
    %v1499 = vadd.f32 %v1427, %v1498
    %v1500 = vpop.f32.mrf.mxu0
    %1501 = vdwg.mxu0
    %vm1502 = vcmp.gt.f32.partialorder %v1499, 0.0
    %v1503 = vmul.f32 %v1499, 0.01
    %v1504 = vsel %vm1502, %v1499, %v1503
    %v1506 = vlaneseq
    %v1507 = vshrl.u32 %v1506, 7
    %v1508 = vsub.s32 0, %v1507
    %v1509 = vrot.slane %v151, %v1508
    %v1512 = vsel %vm152, %v1504, 0
    %1514 = vmatprep.subr.mxu0 0.0
    %1515 = vmatpush1.msra.mxu0 0.0
    %1516 = vmatprep.subr.mxu0 0.0
    %1517 = vmatpush1.msra.mxu0 0.0
    %1518 = vmatprep.subr.mxu0 0.0
    %1519 = vmatpush1.msra.mxu0 0.0
    %1520 = vmatprep.subr.mxu0 0.0
    %1521 = vmatpush1.msra.mxu0 0.0
    %1522 = vmatprep.subr.mxu0 0.0
    %1523 = vmatpush1.msra.mxu0 0.0
    %1524 = vmatprep.subr.mxu0 0.0
    %1525 = vmatpush1.msra.mxu0 0.0
    %1526 = vmatprep.subr.mxu0 0.0
    %1527 = vmatpush1.msra.mxu0 0.0
    %1528 = vmatprep.subr.mxu0 0.0
    %1529 = vmatpush1.msra.mxu0 0.0
    %1530 = vmatprep.subr.mxu0 0.0
    %1531 = vmatpush1.msra.mxu0 0.0
    %1532 = vmatprep.subr.mxu0 0.0
    %1533 = vmatpush1.msra.mxu0 0.0
    %1534 = vmatprep.subr.mxu0 0.0
    %1535 = vmatpush1.msra.mxu0 0.0
    %1536 = vmatprep.subr.mxu0 0.0
    %1537 = vmatpush1.msra.mxu0 0.0
    %1538 = vmatprep.subr.mxu0 0.0
    %1539 = vmatpush1.msra.mxu0 %v150
    %1540 = vmatprep.subr.mxu0 0.0
    %1541 = vmatpush1.msra.mxu0 %v149
    %1542 = vmatprep.subr.mxu0 0.0
    %1543 = vmatpush1.msra.mxu0 %v148
    %1544 = vmatprep.subr.mxu0 0.0
    %1545 = vmatpush1.msra.mxu0 %v147
    %1546 = vmatprep.subr.mxu0 0.0
    %1547 = vmatpush2.msra.mxu0 0.0
    %1548 = vmatprep.subr.mxu0 0.0
    %1549 = vmatpush2.msra.mxu0 0.0
    %1550 = vmatprep.subr.mxu0 0.0
    %1551 = vmatpush2.msra.mxu0 0.0
    %1552 = vmatprep.subr.mxu0 0.0
    %1553 = vmatpush2.msra.mxu0 0.0
    %1554 = vmatprep.subr.mxu0 0.0
    %1555 = vmatpush2.msra.mxu0 0.0
    %1556 = vmatprep.subr.mxu0 0.0
    %1557 = vmatpush2.msra.mxu0 0.0
    %1558 = vmatprep.subr.mxu0 0.0
    %1559 = vmatpush2.msra.mxu0 0.0
    %1560 = vmatprep.subr.mxu0 0.0
    %1561 = vmatpush2.msra.mxu0 0.0
    %1562 = vmatprep.subr.mxu0 0.0
    %1563 = vmatpush2.msra.mxu0 0.0
    %1564 = vmatprep.subr.mxu0 0.0
    %1565 = vmatpush2.msra.mxu0 0.0
    %1566 = vmatprep.subr.mxu0 0.0
    %1567 = vmatpush2.msra.mxu0 0.0
    %1568 = vmatprep.subr.mxu0 0.0
    %1569 = vmatpush2.msra.mxu0 0.0
    %1570 = vmatprep.subr.mxu0 0.0
    %1571 = vmatpush2.msra.mxu0 0.0
    %1572 = vmatprep.subr.mxu0 0.0
    %1573 = vmatpush2.msra.mxu0 0.0
    %1574 = vmatprep.subr.mxu0 0.0
    %1575 = vmatpush2.msra.mxu0 0.0
    %1576 = vmatprep.subr.mxu0 0.0
    %1577 = vmatpush2.msra.mxu0 0.0
    %1578 = vmatprep.mubr.f32.mxu0 0.0
    %1579 = vmatmul.mubr.f32.gmra.mxu0 %v1512
    %v1580 = vpop.f32.mrf.mxu0
    %v1581 = vadd.f32 %v1509, %v1580
    %v1582 = vpop.f32.mrf.mxu0
    %1583 = vdwg.mxu0
    %vm1584 = vcmask 33792
    %1585 = vst.msk [vmem:[#allocation2] sm:$0x3] %vm1584, %v1581
    // Predicated region
    $region42: #{tpu_custom_call.1} parent=1 // pred_check
      _
    $region43: #{tpu_custom_call.1} parent=1 // pred_check_branch
      %1587 = sbr.rel (0) target = $region45
    $region44: #{tpu_custom_call.1} parent=1 // pred_region
      %s1589 = ssub.s32 32, 32
      %1590 = vsyncadd [#allocation3], %s1589
      %s1592 = sshll.u32 [#allocation2], 4
      %s1593 = int_to_ptr.vmem [resolvable:$true] %s1592
      %1595 = dma.vmem_to_hbm [thread:$0]  %s1593, 32, %s10, [#allocation3]
    $region45: #{tpu_custom_call.1} parent=1 // pred_fallthru
      _
    // Predicated region
    $region46: #{tpu_custom_call.1} parent=1 // pred_check
      _
    $region47: #{tpu_custom_call.1} parent=1 // pred_check_branch
      %1597 = sbr.rel (0) target = $region49
    $region48: #{tpu_custom_call.1} parent=1 // pred_region
      %1598 = dma.done [#allocation3], 32
    $region49: #{tpu_custom_call.1} parent=1 // pred_fallthru
      _
    %1599 = vsyncpa [#allocation3], 1

</llo_original>
